<compile_context>
chip_gen: v6e
topology: v6e:2x2x1
jax: 0.10.0
libtpu: 0.0.40
codegen_flags: <defaults>
</compile_context>

<pallas_src>
import jax
import jax.numpy as jnp
from jax import lax
from jax.experimental import pallas as pl
from jax.experimental.pallas import tpu as pltpu

_EPS = 1e-7
_LANES = 128
_MAX_POS_BUCKET = 128     # positives padded to fixed buckets -> stable compiles


# ---------------------------------------------------------------------------
# Per-M-block kernel: emits partial [sum CE, sum L1, sum (1-GIoU)] in one row.
# ---------------------------------------------------------------------------
def _transt_block_kernel(logits_ref, labels_ref, bbox_ref, idx_ref, tbox_ref,
                         out_ref):
    f32 = jnp.float32
    tmb = labels_ref.shape[0]          # number of 128-wide rows in this block
    max_pos = idx_ref.shape[0]         # padded positive-slot count

    # ---- classification: 2-class CE partial sum on dense (TMB,128) vregs ---
    a = logits_ref[0].astype(f32)      # class-0 logit plane (TMB, 128)
    b = logits_ref[1].astype(f32)      # class-1 logit plane
    tgt = labels_ref[...]              # int32, -1 = lane/row padding
    # pairwise log-sum-exp (EUP exp/log), select instead of one-hot over C=2
    lse = jnp.maximum(a, b) + jnp.log(1.0 + jnp.exp(-jnp.abs(a - b)))
    nll = lse - jnp.where(tgt == 0, a, b)
    cls_part = jnp.sum(jnp.where(tgt >= 0, nll, 0.0))            # scalar

    # ---- factored gather of the positives that fall inside this block ------
    idx = idx_ref[...]                                  # (MAX_POS, 1), -1 = pad
    block_start = pl.program_id(0) * (tmb * _LANES)
    rel = idx - block_start
    in_blk = (idx >= 0) & (rel >= 0) & (rel < tmb * _LANES)       # (MAX_POS,1)
    sub = rel >> 7                                      # sublane-row within block
    lane = rel & (_LANES - 1)                           # lane within the row

    # tiny block one-hot (MAX_POS, TMB), exact 0/1 in bf16 -> 1-pass MXU matmul
    sub_iota = lax.broadcasted_iota(jnp.int32, (max_pos, tmb), 1)
    sub_oh = ((sub_iota == sub) & in_blk).astype(jnp.bfloat16)
    # lane one-hot (MAX_POS, 128) resolved with a single lane reduce per coord
    lane_iota = lax.broadcasted_iota(jnp.int32, (max_pos, _LANES), 1)
    lane_oh = lane_iota == lane

    src = []
    for c in range(4):                                  # cx, cy, w, h planes
        plane = bbox_ref[c].astype(jnp.bfloat16)        # (TMB, 128)
        sel = jnp.dot(sub_oh, plane, preferred_element_type=f32)   # (MAX_POS,128)
        src.append(jnp.sum(jnp.where(lane_oh, sel, 0.0), axis=1, keepdims=True))
    scx, scy, sw, sh = src                              # each (MAX_POS, 1)

    tbox = tbox_ref[...].astype(f32)                    # (MAX_POS, 4) cxcywh
    tcx, tcy, tw, th = (tbox[:, 0:1], tbox[:, 1:2], tbox[:, 2:3], tbox[:, 3:4])
    msk = in_blk.astype(f32)                            # (MAX_POS, 1)

    # ---- L1 partial sum (positives of this block only) ---------------------
    l1_part = jnp.sum((jnp.abs(scx - tcx) + jnp.abs(scy - tcy)
                       + jnp.abs(sw - tw) + jnp.abs(sh - th)) * msk)

    # ---- GIoU partial sum (exact divisions; eps only guards masked rows) ---
    sx0, sy0 = scx - 0.5 * sw, scy - 0.5 * sh
    sx1, sy1 = scx + 0.5 * sw, scy + 0.5 * sh
    tx0, ty0 = tcx - 0.5 * tw, tcy - 0.5 * th
    tx1, ty1 = tcx + 0.5 * tw, tcy + 0.5 * th
    area_s = (sx1 - sx0) * (sy1 - sy0)
    area_t = (tx1 - tx0) * (ty1 - ty0)
    iw = jnp.maximum(jnp.minimum(sx1, tx1) - jnp.maximum(sx0, tx0), 0.0)
    ih = jnp.maximum(jnp.minimum(sy1, ty1) - jnp.maximum(sy0, ty0), 0.0)
    inter = iw * ih
    union = area_s + area_t - inter
    iou = inter / (union + _EPS)
    area_e = ((jnp.maximum(sx1, tx1) - jnp.minimum(sx0, tx0))
              * (jnp.maximum(sy1, ty1) - jnp.minimum(sy0, ty0)))
    giou = iou - (area_e - union) / (area_e + _EPS)
    giou_part = jnp.sum((1.0 - giou) * msk)

    # ---- lane-dense (1,1,128) partial row: [cls, l1, giou, 0, ...] ---------
    lanes = lax.broadcasted_iota(jnp.int32, (1, 1, _LANES), 2)
    out_ref[...] = jnp.where(lanes == 0, cls_part,
                   jnp.where(lanes == 1, l1_part,
                   jnp.where(lanes == 2, giou_part, 0.0))).astype(f32)


# ---------------------------------------------------------------------------
# Wrapper: layout plumbing, one pallas_call over the M grid, tiny reduction.
# ---------------------------------------------------------------------------
def _round_up(n, m):
    return ((n + m - 1) // m) * m


def _pad_last(x, target, value=0):
    pad = target - x.shape[-1]
    if pad == 0:
        return x
    widths = [(0, 0)] * (x.ndim - 1) + [(0, pad)]
    return jnp.pad(x, widths, constant_values=value)


@jax.jit
def _transt_losses(predicted_class, predicted_bbox, target_class,
                   num_boxes_pos, batch_ids, feat_indices, target_boxes):
    """Returns (cls CE mean, L1/num_pos, GIoU/num_pos) as float32 scalars."""
    B, N, C = predicted_class.shape
    assert C == 2, "TransT classification head is 2-class (fg/bg)"
    M = B * N

    # --- M tiling: TMB rows of 128 locations per grid step ------------------
    nblk = pl.cdiv(M, _LANES)
    tmb = 8
    while tmb < 32 and nblk > tmb:
        tmb *= 2
    nblk_pad = _round_up(nblk, tmb)
    Mp = nblk_pad * _LANES
    G = nblk_pad // tmb

    # --- positives: fixed-bucket padding (no recompile when P changes) ------
    if batch_ids is None:       # no positives: fully-masked dummy gather
        flat_idx = jnp.full((1,), -1, jnp.int32)
        target_boxes = jnp.zeros((1, 4), predicted_bbox.dtype)
    else:
        flat_idx = (batch_ids.astype(jnp.int32) * N
                    + feat_indices.astype(jnp.int32))
    P = flat_idx.shape[0]
    Pp = _round_up(max(P, 1), _MAX_POS_BUCKET)

    # --- layout plumbing (dtype preserved; f32/bf16 casts happen in-kernel) --
    # TODO(synk): have the model heads emit these (C, M/128, 128) layouts
    # directly to remove the wrapper transposes/pads entirely.
    logits3 = _pad_last(predicted_class.reshape(M, C).swapaxes(0, 1),
                        Mp).reshape(C, nblk_pad, _LANES)
    labels2 = _pad_last(target_class.reshape(1, M).astype(jnp.int32),
                        Mp, -1).reshape(nblk_pad, _LANES)
    bbox3 = _pad_last(predicted_bbox.reshape(M, 4).swapaxes(0, 1),
                      Mp).reshape(4, nblk_pad, _LANES)
    idx_col = _pad_last(flat_idx.reshape(1, P), Pp, -1).reshape(Pp, 1)
    tbox = jnp.pad(target_boxes, ((0, Pp - P), (0, 0)))

    out = pl.pallas_call(
        _transt_block_kernel,
        out_shape=jax.ShapeDtypeStruct((G, 1, _LANES), jnp.float32),
        grid=(G,),
        in_specs=[
            pl.BlockSpec((C, tmb, _LANES), lambda i: (0, i, 0)),   # logit planes
            pl.BlockSpec((tmb, _LANES), lambda i: (i, 0)),         # class labels
            pl.BlockSpec((4, tmb, _LANES), lambda i: (0, i, 0)),   # bbox planes
            pl.BlockSpec((Pp, 1), lambda i: (0, 0)),               # positive idx
            pl.BlockSpec((Pp, 4), lambda i: (0, 0)),               # target boxes
        ],
        out_specs=pl.BlockSpec((1, 1, _LANES), lambda i: (i, 0, 0)),
        compiler_params=pltpu.CompilerParams(
            dimension_semantics=("parallel",),        # megacore-splittable (v7x)
            vmem_limit_bytes=32 * 1024 * 1024),
    )(logits3, labels2, bbox3, idx_col, tbox)

    # Tiny exact finalize fused into one XLA reduce: sum partials + normalize.
    sums = jnp.sum(out, axis=(0, 1))                   # (128,)
    nb = jnp.maximum(jnp.asarray(num_boxes_pos, jnp.float32), 1.0)
    cls_loss = sums[0] / float(M)
    l1_loss = sums[1] / nb
    giou_loss = sums[2] / nb
    return cls_loss, l1_loss, giou_loss


class TransTCriterionPallas:
    """Pallas TransT criterion: [cls CE (mean), L1/num_pos, GIoU/num_pos].

    The injected cls/bbox/iou losses of the PyTorch module are fixed to the
    standard TransT choices and fused into a single TPU kernel.  The
    iou_aware / combined branches are not implemented.
    """

    def __init__(self, cls_loss=None, bbox_loss=None, iou_loss=None):
        del cls_loss, bbox_loss, iou_loss   # fused; kept for API parity only

    def __call__(self, predicted, label):
        predicted_class = predicted[0]          # (B, N, 2) logits
        predicted_bounding_box = predicted[1]   # (B, N, 4) cxcywh
        (num_boxes_pos,
         batch_ids,                             # target_feat_map_indices_batch_id_vector
         feat_indices,                          # target_feat_map_indices
         target_class_label_vector,
         target_bounding_box_label_matrix) = label

        # reduce_mean_ is a cross-device all-reduce mean -> no-op on 1 device.
        cls_l, l1_l, giou_l = _transt_losses(
            predicted_class, predicted_bounding_box, target_class_label_vector,
            num_boxes_pos, batch_ids, feat_indices,
            target_bounding_box_label_matrix)
        if batch_ids is None:
            zero = jnp.mean(predicted_bounding_box * 0)
            return [cls_l, zero, zero]
        return [cls_l, l1_l, giou_l]


# ---------------------------------------------------------------------------
# Pure-JAX reference (validation only).
# ---------------------------------------------------------------------------
def _reference_losses(predicted_class, predicted_bbox, num_boxes_pos,
                      batch_ids, feat_indices, target_class, target_boxes):
    B, N, C = predicted_class.shape
    logits = predicted_class.reshape(B * N, C).astype(jnp.float32)
    tgt = target_class.reshape(B * N)
    lse = jax.scipy.special.logsumexp(logits, axis=-1)
    tgt_logit = jnp.take_along_axis(logits, tgt[:, None], axis=-1)[:, 0]
    cls = jnp.mean(lse - tgt_logit)

    nbp = jnp.maximum(jnp.asarray(num_boxes_pos, jnp.float32), 1.0)
    src = predicted_bbox[batch_ids, feat_indices].astype(jnp.float32)
    tgtb = target_boxes.astype(jnp.float32)
    l1 = jnp.sum(jnp.abs(src - tgtb)) / nbp

    def to_xyxy(b):
        cx, cy, w, h = b[:, 0], b[:, 1], b[:, 2], b[:, 3]
        return cx - 0.5 * w, cy - 0.5 * h, cx + 0.5 * w, cy + 0.5 * h

    sx0, sy0, sx1, sy1 = to_xyxy(src)
    tx0, ty0, tx1, ty1 = to_xyxy(tgtb)
    area_s = (sx1 - sx0) * (sy1 - sy0)
    area_t = (tx1 - tx0) * (ty1 - ty0)
    iw = jnp.maximum(jnp.minimum(sx1, tx1) - jnp.maximum(sx0, tx0), 0.0)
    ih = jnp.maximum(jnp.minimum(sy1, ty1) - jnp.maximum(sy0, ty0), 0.0)
    inter = iw * ih
    union = area_s + area_t - inter
    iou = inter / union
    area_e = ((jnp.maximum(sx1, tx1) - jnp.minimum(sx0, tx0))
              * (jnp.maximum(sy1, ty1) - jnp.minimum(sy0, ty0)))
    giou = iou - (area_e - union) / area_e
    return cls, l1, jnp.sum(1.0 - giou) / nbp


if __name__ == "__main__":
    key = jax.random.PRNGKey(0)
    k1, k2, k3, k4 = jax.random.split(key, 4)

    B, N, C, P = 2, 64, 2, 16   # batch, queries (8x8 feat map), classes, positives

    predicted_class = jax.random.normal(k1, (B, N, C), dtype=jnp.float32)
    predicted_bbox = jax.random.uniform(k2, (B, N, 4), dtype=jnp.float32,
                                        minval=0.2, maxval=0.4)

    # positive assignment: 8 positives per batch element
    batch_ids = jnp.concatenate([jnp.zeros((P // 2,), jnp.int32),
                                 jnp.ones((P // 2,), jnp.int32)])
    feat_indices = jax.random.randint(k3, (P,), 0, N, dtype=jnp.int32)

    # class labels: 1 = background everywhere, 0 = foreground at positives
    target_class = jnp.ones((B, N), jnp.int32).at[batch_ids, feat_indices].set(0)
    target_boxes = jax.random.uniform(k4, (P, 4), dtype=jnp.float32,
                                      minval=0.2, maxval=0.4)
    num_boxes_pos = float(P)

    criterion = TransTCriterionPallas()
    predicted = (predicted_class, predicted_bbox)
    label = (num_boxes_pos, batch_ids, feat_indices, target_class, target_boxes)

    losses = criterion(predicted, label)
    losses = [jax.block_until_ready(l) for l in losses]

    assert len(losses) == 3
    assert all(bool(jnp.isfinite(l)) for l in losses)

    # validate against the pure-JAX reference (tolerance covers the intentional
    # bf16 1-pass MXU gather of the positive box coordinates)
    ref = _reference_losses(predicted_class, predicted_bbox, num_boxes_pos,
                            batch_ids, feat_indices, target_class, target_boxes)
    for got, want in zip(losses, ref):
        g, w = float(got), float(want)
        assert abs(g - w) <= 5e-2 * max(1.0, abs(w)), (g, w)

    print("KERNEL_OK")
</pallas_src>

<mosaic_0001>
module attributes {stable_mosaic.version = 11 : i64} {
  func.func @_transt_block_kernel(%arg0: i32, %arg1: memref<2x8x128xf32, #tpu.memory_space<vmem>>, %arg2: memref<8x128xi32, #tpu.memory_space<vmem>>, %arg3: memref<4x8x128xf32, #tpu.memory_space<vmem>>, %arg4: memref<128x1xi32, #tpu.memory_space<vmem>>, %arg5: memref<128x4xf32, #tpu.memory_space<vmem>>, %arg6: memref<1x1x128xf32, #tpu.memory_space<vmem>>) attributes {dimension_semantics = [#tpu.dimension_semantics<parallel>], iteration_bounds = array<i64: 1>, scalar_prefetch = 0 : i64, scratch_operands = 0 : i64, tpu.core_type = #tpu.core_type<tc>, window_params = [{transform_indices = @transform_0, window_bounds = array<i64: 2, 8, 128>}, {transform_indices = @transform_1, window_bounds = array<i64: 8, 128>}, {transform_indices = @transform_2, window_bounds = array<i64: 4, 8, 128>}, {pipeline_mode = #tpu.pipeline_mode<synchronous>, transform_indices = @transform_3, window_bounds = array<i64: 128, 1>}, {pipeline_mode = #tpu.pipeline_mode<synchronous>, transform_indices = @transform_4, window_bounds = array<i64: 128, 4>}, {transform_indices = @transform_5, window_bounds = array<i64: 1, 1, 128>}]} {
    %c0 = arith.constant 0 : index
    %c0_0 = arith.constant 0 : index
    %c0_1 = arith.constant 0 : index
    %0 = vector.load %arg1[%c0, %c0_0, %c0_1] : memref<2x8x128xf32, #tpu.memory_space<vmem>>, vector<1x8x128xf32>
    %1 = vector.shape_cast %0 : vector<1x8x128xf32> to vector<8x128xf32>
    %c1 = arith.constant 1 : index
    %c0_2 = arith.constant 0 : index
    %c0_3 = arith.constant 0 : index
    %2 = vector.load %arg1[%c1, %c0_2, %c0_3] : memref<2x8x128xf32, #tpu.memory_space<vmem>>, vector<1x8x128xf32>
    %3 = vector.shape_cast %2 : vector<1x8x128xf32> to vector<8x128xf32>
    %c0_4 = arith.constant 0 : index
    %c0_5 = arith.constant 0 : index
    %4 = vector.load %arg2[%c0_4, %c0_5] : memref<8x128xi32, #tpu.memory_space<vmem>>, vector<8x128xi32>
    %5 = arith.maximumf %1, %3 : vector<8x128xf32>
    %6 = arith.subf %1, %3 : vector<8x128xf32>
    %7 = math.absf %6 : vector<8x128xf32>
    %cst = arith.constant 0.000000e+00 : f32
    %8 = vector.broadcast %cst : f32 to vector<8x128xf32>
    %9 = arith.subf %8, %7 : vector<8x128xf32>
    %10 = math.exp %9 : vector<8x128xf32>
    %cst_6 = arith.constant 1.000000e+00 : f32
    %11 = vector.broadcast %cst_6 : f32 to vector<8x128xf32>
    %12 = arith.addf %11, %10 : vector<8x128xf32>
    %13 = math.log %12 : vector<8x128xf32>
    %14 = arith.addf %5, %13 : vector<8x128xf32>
    %c0_i32 = arith.constant 0 : i32
    %15 = vector.broadcast %c0_i32 : i32 to vector<8x128xi32>
    %16 = arith.cmpi eq, %4, %15 : vector<8x128xi32>
    %17 = arith.select %16, %1, %3 : vector<8x128xi1>, vector<8x128xf32>
    %18 = arith.subf %14, %17 : vector<8x128xf32>
    %c0_i32_7 = arith.constant 0 : i32
    %19 = vector.broadcast %c0_i32_7 : i32 to vector<8x128xi32>
    %20 = arith.cmpi sge, %4, %19 : vector<8x128xi32>
    %cst_8 = arith.constant 0.000000e+00 : f32
    %21 = vector.broadcast %cst_8 : f32 to vector<8x128xf32>
    %22 = arith.select %20, %18, %21 : vector<8x128xi1>, vector<8x128xf32>
    %23 = vector.shape_cast %22 : vector<8x128xf32> to vector<1x8x128xf32>
    %cst_9 = arith.constant dense<0.000000e+00> : vector<1xf32>
    %24 = vector.multi_reduction <add>, %23, %cst_9 [1, 2] : vector<1x8x128xf32> to vector<1xf32>
    %25 = vector.shape_cast %24 : vector<1xf32> to vector<1x1x1xf32>
    %26 = vector.extract %25[0, 0, 0] : f32 from vector<1x1x1xf32>
    %c0_10 = arith.constant 0 : index
    %c0_11 = arith.constant 0 : index
    %27 = vector.load %arg4[%c0_10, %c0_11] : memref<128x1xi32, #tpu.memory_space<vmem>>, vector<128x1xi32>
    %c1024_i32 = arith.constant 1024 : i32
    %28 = arith.muli %arg0, %c1024_i32 : i32
    %29 = vector.broadcast %28 : i32 to vector<128x1xi32>
    %30 = arith.subi %27, %29 : vector<128x1xi32>
    %c0_i32_12 = arith.constant 0 : i32
    %31 = vector.broadcast %c0_i32_12 : i32 to vector<128x1xi32>
    %32 = arith.cmpi sge, %27, %31 : vector<128x1xi32>
    %c0_i32_13 = arith.constant 0 : i32
    %33 = vector.broadcast %c0_i32_13 : i32 to vector<128x1xi32>
    %34 = arith.cmpi sge, %30, %33 : vector<128x1xi32>
    %35 = arith.andi %32, %34 : vector<128x1xi1>
    %c1024_i32_14 = arith.constant 1024 : i32
    %36 = vector.broadcast %c1024_i32_14 : i32 to vector<128x1xi32>
    %37 = arith.cmpi slt, %30, %36 : vector<128x1xi32>
    %38 = arith.andi %35, %37 : vector<128x1xi1>
    %c7_i32 = arith.constant 7 : i32
    %39 = vector.broadcast %c7_i32 : i32 to vector<128x1xi32>
    %40 = arith.shrsi %30, %39 : vector<128x1xi32>
    %c127_i32 = arith.constant 127 : i32
    %41 = vector.broadcast %c127_i32 : i32 to vector<128x1xi32>
    %42 = arith.andi %30, %41 : vector<128x1xi32>
    %43 = tpu.iota {dimensions = array<i32: 1>} : vector<128x8xi32>
    %44 = vector.broadcast %40 : vector<128x1xi32> to vector<128x8xi32>
    %45 = arith.cmpi eq, %43, %44 : vector<128x8xi32>
    %46 = vector.broadcast %38 : vector<128x1xi1> to vector<128x8xi1>
    %47 = arith.andi %45, %46 : vector<128x8xi1>
    %48 = arith.extui %47 : vector<128x8xi1> to vector<128x8xi32>
    %49 = arith.sitofp %48 : vector<128x8xi32> to vector<128x8xf32>
    %50 = arith.truncf %49 : vector<128x8xf32> to vector<128x8xbf16>
    %51 = tpu.iota {dimensions = array<i32: 1>} : vector<128x128xi32>
    %52 = vector.broadcast %42 : vector<128x1xi32> to vector<128x128xi32>
    %53 = arith.cmpi eq, %51, %52 : vector<128x128xi32>
    %c0_15 = arith.constant 0 : index
    %c0_16 = arith.constant 0 : index
    %c0_17 = arith.constant 0 : index
    %54 = vector.load %arg3[%c0_15, %c0_16, %c0_17] : memref<4x8x128xf32, #tpu.memory_space<vmem>>, vector<1x8x128xf32>
    %55 = vector.shape_cast %54 : vector<1x8x128xf32> to vector<8x128xf32>
    %56 = arith.truncf %55 : vector<8x128xf32> to vector<8x128xbf16>
    %cst_18 = arith.constant dense<0.000000e+00> : vector<128x128xf32>
    %57 = tpu.matmul %50, %56, %cst_18 {dimension_numbers = #tpu.dot_dimension_numbers<[1], [0], [0], [1], [0, 0, 1, 1], [], []>} : vector<128x8xbf16>, vector<8x128xbf16>, vector<128x128xf32> -> vector<128x128xf32>
    %cst_19 = arith.constant 0.000000e+00 : f32
    %58 = vector.broadcast %cst_19 : f32 to vector<128x128xf32>
    %59 = arith.select %53, %57, %58 : vector<128x128xi1>, vector<128x128xf32>
    %cst_20 = arith.constant dense<0.000000e+00> : vector<128xf32>
    %60 = vector.multi_reduction <add>, %59, %cst_20 [1] : vector<128x128xf32> to vector<128xf32>
    %61 = vector.shape_cast %60 : vector<128xf32> to vector<128x1xf32>
    %c1_21 = arith.constant 1 : index
    %c0_22 = arith.constant 0 : index
    %c0_23 = arith.constant 0 : index
    %62 = vector.load %arg3[%c1_21, %c0_22, %c0_23] : memref<4x8x128xf32, #tpu.memory_space<vmem>>, vector<1x8x128xf32>
    %63 = vector.shape_cast %62 : vector<1x8x128xf32> to vector<8x128xf32>
    %64 = arith.truncf %63 : vector<8x128xf32> to vector<8x128xbf16>
    %cst_24 = arith.constant dense<0.000000e+00> : vector<128x128xf32>
    %65 = tpu.matmul %50, %64, %cst_24 {dimension_numbers = #tpu.dot_dimension_numbers<[1], [0], [0], [1], [0, 0, 1, 1], [], []>} : vector<128x8xbf16>, vector<8x128xbf16>, vector<128x128xf32> -> vector<128x128xf32>
    %cst_25 = arith.constant 0.000000e+00 : f32
    %66 = vector.broadcast %cst_25 : f32 to vector<128x128xf32>
    %67 = arith.select %53, %65, %66 : vector<128x128xi1>, vector<128x128xf32>
    %cst_26 = arith.constant dense<0.000000e+00> : vector<128xf32>
    %68 = vector.multi_reduction <add>, %67, %cst_26 [1] : vector<128x128xf32> to vector<128xf32>
    %69 = vector.shape_cast %68 : vector<128xf32> to vector<128x1xf32>
    %c2 = arith.constant 2 : index
    %c0_27 = arith.constant 0 : index
    %c0_28 = arith.constant 0 : index
    %70 = vector.load %arg3[%c2, %c0_27, %c0_28] : memref<4x8x128xf32, #tpu.memory_space<vmem>>, vector<1x8x128xf32>
    %71 = vector.shape_cast %70 : vector<1x8x128xf32> to vector<8x128xf32>
    %72 = arith.truncf %71 : vector<8x128xf32> to vector<8x128xbf16>
    %cst_29 = arith.constant dense<0.000000e+00> : vector<128x128xf32>
    %73 = tpu.matmul %50, %72, %cst_29 {dimension_numbers = #tpu.dot_dimension_numbers<[1], [0], [0], [1], [0, 0, 1, 1], [], []>} : vector<128x8xbf16>, vector<8x128xbf16>, vector<128x128xf32> -> vector<128x128xf32>
    %cst_30 = arith.constant 0.000000e+00 : f32
    %74 = vector.broadcast %cst_30 : f32 to vector<128x128xf32>
    %75 = arith.select %53, %73, %74 : vector<128x128xi1>, vector<128x128xf32>
    %cst_31 = arith.constant dense<0.000000e+00> : vector<128xf32>
    %76 = vector.multi_reduction <add>, %75, %cst_31 [1] : vector<128x128xf32> to vector<128xf32>
    %77 = vector.shape_cast %76 : vector<128xf32> to vector<128x1xf32>
    %c3 = arith.constant 3 : index
    %c0_32 = arith.constant 0 : index
    %c0_33 = arith.constant 0 : index
    %78 = vector.load %arg3[%c3, %c0_32, %c0_33] : memref<4x8x128xf32, #tpu.memory_space<vmem>>, vector<1x8x128xf32>
    %79 = vector.shape_cast %78 : vector<1x8x128xf32> to vector<8x128xf32>
    %80 = arith.truncf %79 : vector<8x128xf32> to vector<8x128xbf16>
    %cst_34 = arith.constant dense<0.000000e+00> : vector<128x128xf32>
    %81 = tpu.matmul %50, %80, %cst_34 {dimension_numbers = #tpu.dot_dimension_numbers<[1], [0], [0], [1], [0, 0, 1, 1], [], []>} : vector<128x8xbf16>, vector<8x128xbf16>, vector<128x128xf32> -> vector<128x128xf32>
    %cst_35 = arith.constant 0.000000e+00 : f32
    %82 = vector.broadcast %cst_35 : f32 to vector<128x128xf32>
    %83 = arith.select %53, %81, %82 : vector<128x128xi1>, vector<128x128xf32>
    %cst_36 = arith.constant dense<0.000000e+00> : vector<128xf32>
    %84 = vector.multi_reduction <add>, %83, %cst_36 [1] : vector<128x128xf32> to vector<128xf32>
    %85 = vector.shape_cast %84 : vector<128xf32> to vector<128x1xf32>
    %c0_37 = arith.constant 0 : index
    %c0_38 = arith.constant 0 : index
    %86 = vector.load %arg5[%c0_37, %c0_38] : memref<128x4xf32, #tpu.memory_space<vmem>>, vector<128x4xf32>
    %87 = vector.extract_strided_slice %86 {offsets = [0, 0], sizes = [128, 1], strides = [1, 1]} : vector<128x4xf32> to vector<128x1xf32>
    %88 = vector.extract_strided_slice %86 {offsets = [0, 1], sizes = [128, 1], strides = [1, 1]} : vector<128x4xf32> to vector<128x1xf32>
    %89 = vector.extract_strided_slice %86 {offsets = [0, 2], sizes = [128, 1], strides = [1, 1]} : vector<128x4xf32> to vector<128x1xf32>
    %90 = vector.extract_strided_slice %86 {offsets = [0, 3], sizes = [128, 1], strides = [1, 1]} : vector<128x4xf32> to vector<128x1xf32>
    %91 = arith.extui %38 : vector<128x1xi1> to vector<128x1xi32>
    %92 = arith.sitofp %91 : vector<128x1xi32> to vector<128x1xf32>
    %93 = arith.subf %61, %87 : vector<128x1xf32>
    %94 = math.absf %93 : vector<128x1xf32>
    %95 = arith.subf %69, %88 : vector<128x1xf32>
    %96 = math.absf %95 : vector<128x1xf32>
    %97 = arith.addf %94, %96 : vector<128x1xf32>
    %98 = arith.subf %77, %89 : vector<128x1xf32>
    %99 = math.absf %98 : vector<128x1xf32>
    %100 = arith.addf %97, %99 : vector<128x1xf32>
    %101 = arith.subf %85, %90 : vector<128x1xf32>
    %102 = math.absf %101 : vector<128x1xf32>
    %103 = arith.addf %100, %102 : vector<128x1xf32>
    %104 = arith.mulf %103, %92 : vector<128x1xf32>
    %105 = vector.shape_cast %104 : vector<128x1xf32> to vector<1x128x1xf32>
    %cst_39 = arith.constant dense<0.000000e+00> : vector<1xf32>
    %106 = vector.multi_reduction <add>, %105, %cst_39 [1, 2] : vector<1x128x1xf32> to vector<1xf32>
    %107 = vector.shape_cast %106 : vector<1xf32> to vector<1x1x1xf32>
    %108 = vector.extract %107[0, 0, 0] : f32 from vector<1x1x1xf32>
    %cst_40 = arith.constant 5.000000e-01 : f32
    %109 = vector.broadcast %cst_40 : f32 to vector<128x1xf32>
    %110 = arith.mulf %109, %77 : vector<128x1xf32>
    %111 = arith.subf %61, %110 : vector<128x1xf32>
    %cst_41 = arith.constant 5.000000e-01 : f32
    %112 = vector.broadcast %cst_41 : f32 to vector<128x1xf32>
    %113 = arith.mulf %112, %85 : vector<128x1xf32>
    %114 = arith.subf %69, %113 : vector<128x1xf32>
    %cst_42 = arith.constant 5.000000e-01 : f32
    %115 = vector.broadcast %cst_42 : f32 to vector<128x1xf32>
    %116 = arith.mulf %115, %77 : vector<128x1xf32>
    %117 = arith.addf %61, %116 : vector<128x1xf32>
    %cst_43 = arith.constant 5.000000e-01 : f32
    %118 = vector.broadcast %cst_43 : f32 to vector<128x1xf32>
    %119 = arith.mulf %118, %85 : vector<128x1xf32>
    %120 = arith.addf %69, %119 : vector<128x1xf32>
    %cst_44 = arith.constant 5.000000e-01 : f32
    %121 = vector.broadcast %cst_44 : f32 to vector<128x1xf32>
    %122 = arith.mulf %121, %89 : vector<128x1xf32>
    %123 = arith.subf %87, %122 : vector<128x1xf32>
    %cst_45 = arith.constant 5.000000e-01 : f32
    %124 = vector.broadcast %cst_45 : f32 to vector<128x1xf32>
    %125 = arith.mulf %124, %90 : vector<128x1xf32>
    %126 = arith.subf %88, %125 : vector<128x1xf32>
    %cst_46 = arith.constant 5.000000e-01 : f32
    %127 = vector.broadcast %cst_46 : f32 to vector<128x1xf32>
    %128 = arith.mulf %127, %89 : vector<128x1xf32>
    %129 = arith.addf %87, %128 : vector<128x1xf32>
    %cst_47 = arith.constant 5.000000e-01 : f32
    %130 = vector.broadcast %cst_47 : f32 to vector<128x1xf32>
    %131 = arith.mulf %130, %90 : vector<128x1xf32>
    %132 = arith.addf %88, %131 : vector<128x1xf32>
    %133 = arith.subf %117, %111 : vector<128x1xf32>
    %134 = arith.subf %120, %114 : vector<128x1xf32>
    %135 = arith.mulf %133, %134 : vector<128x1xf32>
    %136 = arith.subf %129, %123 : vector<128x1xf32>
    %137 = arith.subf %132, %126 : vector<128x1xf32>
    %138 = arith.mulf %136, %137 : vector<128x1xf32>
    %139 = arith.minimumf %117, %129 : vector<128x1xf32>
    %140 = arith.maximumf %111, %123 : vector<128x1xf32>
    %141 = arith.subf %139, %140 : vector<128x1xf32>
    %cst_48 = arith.constant 0.000000e+00 : f32
    %142 = vector.broadcast %cst_48 : f32 to vector<128x1xf32>
    %143 = arith.maximumf %141, %142 : vector<128x1xf32>
    %144 = arith.minimumf %120, %132 : vector<128x1xf32>
    %145 = arith.maximumf %114, %126 : vector<128x1xf32>
    %146 = arith.subf %144, %145 : vector<128x1xf32>
    %cst_49 = arith.constant 0.000000e+00 : f32
    %147 = vector.broadcast %cst_49 : f32 to vector<128x1xf32>
    %148 = arith.maximumf %146, %147 : vector<128x1xf32>
    %149 = arith.mulf %143, %148 : vector<128x1xf32>
    %150 = arith.addf %135, %138 : vector<128x1xf32>
    %151 = arith.subf %150, %149 : vector<128x1xf32>
    %cst_50 = arith.constant 1.000000e-07 : f32
    %152 = vector.broadcast %cst_50 : f32 to vector<128x1xf32>
    %153 = arith.addf %151, %152 : vector<128x1xf32>
    %154 = arith.divf %149, %153 : vector<128x1xf32>
    %155 = arith.maximumf %117, %129 : vector<128x1xf32>
    %156 = arith.minimumf %111, %123 : vector<128x1xf32>
    %157 = arith.subf %155, %156 : vector<128x1xf32>
    %158 = arith.maximumf %120, %132 : vector<128x1xf32>
    %159 = arith.minimumf %114, %126 : vector<128x1xf32>
    %160 = arith.subf %158, %159 : vector<128x1xf32>
    %161 = arith.mulf %157, %160 : vector<128x1xf32>
    %162 = arith.subf %161, %151 : vector<128x1xf32>
    %cst_51 = arith.constant 1.000000e-07 : f32
    %163 = vector.broadcast %cst_51 : f32 to vector<128x1xf32>
    %164 = arith.addf %161, %163 : vector<128x1xf32>
    %165 = arith.divf %162, %164 : vector<128x1xf32>
    %166 = arith.subf %154, %165 : vector<128x1xf32>
    %cst_52 = arith.constant 1.000000e+00 : f32
    %167 = vector.broadcast %cst_52 : f32 to vector<128x1xf32>
    %168 = arith.subf %167, %166 : vector<128x1xf32>
    %169 = arith.mulf %168, %92 : vector<128x1xf32>
    %170 = vector.shape_cast %169 : vector<128x1xf32> to vector<1x128x1xf32>
    %cst_53 = arith.constant dense<0.000000e+00> : vector<1xf32>
    %171 = vector.multi_reduction <add>, %170, %cst_53 [1, 2] : vector<1x128x1xf32> to vector<1xf32>
    %172 = vector.shape_cast %171 : vector<1xf32> to vector<1x1x1xf32>
    %173 = vector.extract %172[0, 0, 0] : f32 from vector<1x1x1xf32>
    %174 = tpu.iota {dimensions = array<i32: 2>} : vector<1x1x128xi32>
    %c0_i32_54 = arith.constant 0 : i32
    %175 = vector.broadcast %c0_i32_54 : i32 to vector<1x1x128xi32>
    %176 = arith.cmpi eq, %174, %175 : vector<1x1x128xi32>
    %c1_i32 = arith.constant 1 : i32
    %177 = vector.broadcast %c1_i32 : i32 to vector<1x1x128xi32>
    %178 = arith.cmpi eq, %174, %177 : vector<1x1x128xi32>
    %c2_i32 = arith.constant 2 : i32
    %179 = vector.broadcast %c2_i32 : i32 to vector<1x1x128xi32>
    %180 = arith.cmpi eq, %174, %179 : vector<1x1x128xi32>
    %cst_55 = arith.constant 0.000000e+00 : f32
    %181 = vector.broadcast %173 : f32 to vector<1x1x128xf32>
    %182 = vector.broadcast %cst_55 : f32 to vector<1x1x128xf32>
    %183 = arith.select %180, %181, %182 : vector<1x1x128xi1>, vector<1x1x128xf32>
    %184 = vector.broadcast %108 : f32 to vector<1x1x128xf32>
    %185 = arith.select %178, %184, %183 : vector<1x1x128xi1>, vector<1x1x128xf32>
    %186 = vector.broadcast %26 : f32 to vector<1x1x128xf32>
    %187 = arith.select %176, %186, %185 : vector<1x1x128xi1>, vector<1x1x128xf32>
    %c0_56 = arith.constant 0 : index
    %c0_57 = arith.constant 0 : index
    %c0_58 = arith.constant 0 : index
    %188 = vector.load %arg6[%c0_56, %c0_57, %c0_58] : memref<1x1x128xf32, #tpu.memory_space<vmem>>, vector<1x1x128xf32>
    tpu.vector_store %arg6[%c0_56, %c0_57, %c0_58], %187 {strides = array<i32>} : memref<1x1x128xf32, #tpu.memory_space<vmem>>, vector<1x1x128xf32>,
    return
  }
  func.func @transform_0(%arg0: i32) -> (i32, i32, i32) {
    %c0_i32 = arith.constant 0 : i32
    %c0_i32_0 = arith.constant 0 : i32
    %c0_i32_1 = arith.constant 0 : i32
    return %c0_i32, %arg0, %c0_i32_0 : i32, i32, i32
  }
  func.func @transform_1(%arg0: i32) -> (i32, i32) {
    %c0_i32 = arith.constant 0 : i32
    %c0_i32_0 = arith.constant 0 : i32
    return %arg0, %c0_i32 : i32, i32
  }
  func.func @transform_2(%arg0: i32) -> (i32, i32, i32) {
    %c0_i32 = arith.constant 0 : i32
    %c0_i32_0 = arith.constant 0 : i32
    %c0_i32_1 = arith.constant 0 : i32
    return %c0_i32, %arg0, %c0_i32_0 : i32, i32, i32
  }
  func.func @transform_3(%arg0: i32) -> (i32, i32) {
    %c0_i32 = arith.constant 0 : i32
    %c0_i32_0 = arith.constant 0 : i32
    %c0_i32_1 = arith.constant 0 : i32
    return %c0_i32, %c0_i32_0 : i32, i32
  }
  func.func @transform_4(%arg0: i32) -> (i32, i32) {
    %c0_i32 = arith.constant 0 : i32
    %c0_i32_0 = arith.constant 0 : i32
    %c0_i32_1 = arith.constant 0 : i32
    return %c0_i32, %c0_i32_0 : i32, i32
  }
  func.func @transform_5(%arg0: i32) -> (i32, i32, i32) {
    %c0_i32 = arith.constant 0 : i32
    %c0_i32_0 = arith.constant 0 : i32
    %c0_i32_1 = arith.constant 0 : i32
    return %arg0, %c0_i32, %c0_i32_0 : i32, i32, i32
  }
}

</mosaic_0001>

<llo_original>
// kernel: _transt_losses.1
$region0: #{_transt_losses.1}
  #allocation0 [shape = 'u32[]', space=smem, size = 0x4, offset = 0x4, fixed_abs, tag = 'smem constant byte address 0x4 - core index']
  #allocation1 [shape = 'u32[144,128]{1,0:T(1,128)}', space=vmem, size = 0x12000, scoped, tag = 'internal scratch']
  %s0 = inlined_call_operand.vmem [shape: f32[2,8,128], index: 0, kind: input, shape index: {}]
  %s1 = inlined_call_operand.vmem [shape: s32[8,128], index: 1, kind: input, shape index: {}]
  %s2 = inlined_call_operand.vmem [shape: f32[4,8,128], index: 2, kind: input, shape index: {}]
  %s3 = inlined_call_operand.vmem [shape: s32[128,1], index: 3, kind: input, shape index: {}]
  %s4 = inlined_call_operand.vmem [shape: f32[128,4], index: 4, kind: input, shape index: {}]
  %s5 = inlined_call_operand.vmem [shape: f32[1,1,128], index: 5, kind: output, shape index: {}]
  %s6 = sld [smem:[#allocation0]]
  $region30: #{_transt_losses.1} parent=0
    _
  %s8 = ssub.s32 1, %s6
  %s9 = scalar_select 0, %s8, %s6
  // Predicated region
  $region2: #{_transt_losses.1} parent=0 // pred_check
    _
  $region3: #{_transt_losses.1} parent=0 // pred_check_branch
    %11 = sbr.rel (0) target = $region5
  $region4: #{_transt_losses.1} parent=0 // pred_region
    _
  $region5: #{_transt_losses.1} parent=0 // pred_fallthru
    _
  // Predicated region
  $region6: #{_transt_losses.1} parent=0 // pred_check
    _
  $region7: #{_transt_losses.1} parent=0 // pred_check_branch
    %13 = sbr.rel (0) target = $region9
  $region8: #{_transt_losses.1} parent=0 // pred_region
    _
  $region9: #{_transt_losses.1} parent=0 // pred_fallthru
    _
  // Predicated region
  $region10: #{_transt_losses.1} parent=0 // pred_check
    _
  $region11: #{_transt_losses.1} parent=0 // pred_check_branch
    %15 = sbr.rel (0) target = $region13
  $region12: #{_transt_losses.1} parent=0 // pred_region
    _
  $region13: #{_transt_losses.1} parent=0 // pred_fallthru
    _
  // Predicated region
  $region14: #{_transt_losses.1} parent=0 // pred_check
    _
  $region15: #{_transt_losses.1} parent=0 // pred_check_branch
    %17 = sbr.rel (0) target = $region17
  $region16: #{_transt_losses.1} parent=0 // pred_region
    _
  $region17: #{_transt_losses.1} parent=0 // pred_fallthru
    _
  // Predicated region
  $region18: #{_transt_losses.1} parent=0 // pred_check
    _
  $region19: #{_transt_losses.1} parent=0 // pred_check_branch
    %19 = sbr.rel (0) target = $region21
  $region20: #{_transt_losses.1} parent=0 // pred_region
    _
  $region21: #{_transt_losses.1} parent=0 // pred_fallthru
    _
  %v21 = vld [vmem:[%s0] sm:$0xff]
  %s22 = scalar_lea.vmem %s0, 8
  %v23 = vld [vmem:[%s22] sm:$0xff]
  %v24 = vld [vmem:[%s1] sm:$0xff]
  %v25 = vmax.f32 %v21, %v23
  %v26 = vsub.f32 %v21, %v23
  %v27 = vand.u32 2147483647, %v26
  %v28 = vsub.f32 0.0, %v27
  %v29 = vmul.f32 %v28, 1.442695
  %v30 = vpow.pop %v29
  %v31 = vadd.f32 %v30, 1.0
  %v32 = vlog2.pop %v31
  %v33 = vmul.f32 %v32, 0.6931472
  %v34 = vadd.f32 %v25, %v33
  %vm35 = vcmp.eq.s32.totalorder %v24, 0
  %v36 = vsel %vm35, %v21, %v23
  %v37 = vsub.f32 %v34, %v36
  %vm38 = vcmp.ge.s32.totalorder %v24, 0
  %v39 = vsel %vm38, %v37, 0.0
  %40 = vadd.xlane.f32.xlu0 %v39
  %v41 = vpop.xlane.xlu0 %40
  %v42 = vrot.slane %v41, 4
  %v43 = vadd.f32 %v41, %v42
  %v44 = vrot.slane %v43, 2
  %v45 = vadd.f32 %v43, %v44
  %v46 = vrot.slane %v45, 1
  %v47 = vadd.f32 %v45, %v46
  %s48 = vtos %v47
  %v49 = vld [vmem:[%s3] sm:$0xff]
  %v50 = vld [vmem:[%s3 + $0x8] sm:$0xff]
  %v51 = vld [vmem:[%s3 + $0x10] sm:$0xff]
  %v52 = vld [vmem:[%s3 + $0x18] sm:$0xff]
  %v53 = vld [vmem:[%s3 + $0x20] sm:$0xff]
  %v54 = vld [vmem:[%s3 + $0x28] sm:$0xff]
  %v55 = vld [vmem:[%s3 + $0x30] sm:$0xff]
  %v56 = vld [vmem:[%s3 + $0x38] sm:$0xff]
  %v57 = vld [vmem:[%s3 + $0x40] sm:$0xff]
  %v58 = vld [vmem:[%s3 + $0x48] sm:$0xff]
  %v59 = vld [vmem:[%s3 + $0x50] sm:$0xff]
  %v60 = vld [vmem:[%s3 + $0x58] sm:$0xff]
  %v61 = vld [vmem:[%s3 + $0x60] sm:$0xff]
  %v62 = vld [vmem:[%s3 + $0x68] sm:$0xff]
  %v63 = vld [vmem:[%s3 + $0x70] sm:$0xff]
  %v64 = vld [vmem:[%s3 + $0x78] sm:$0xff]
  %s65 = smul.u32 0, 1024
  %v66 = vstv %s65
  %v67 = vsub.s32 %v49, %v66
  %v68 = vsub.s32 %v50, %v66
  %v69 = vsub.s32 %v51, %v66
  %v70 = vsub.s32 %v52, %v66
  %v71 = vsub.s32 %v53, %v66
  %v72 = vsub.s32 %v54, %v66
  %v73 = vsub.s32 %v55, %v66
  %v74 = vsub.s32 %v56, %v66
  %v75 = vsub.s32 %v57, %v66
  %v76 = vsub.s32 %v58, %v66
  %v77 = vsub.s32 %v59, %v66
  %v78 = vsub.s32 %v60, %v66
  %v79 = vsub.s32 %v61, %v66
  %v80 = vsub.s32 %v62, %v66
  %v81 = vsub.s32 %v63, %v66
  %v82 = vsub.s32 %v64, %v66
  %vm83 = vcmp.ge.s32.totalorder %v49, 0
  %vm84 = vcmp.ge.s32.totalorder %v50, 0
  %vm85 = vcmp.ge.s32.totalorder %v51, 0
  %vm86 = vcmp.ge.s32.totalorder %v52, 0
  %vm87 = vcmp.ge.s32.totalorder %v53, 0
  %vm88 = vcmp.ge.s32.totalorder %v54, 0
  %vm89 = vcmp.ge.s32.totalorder %v55, 0
  %vm90 = vcmp.ge.s32.totalorder %v56, 0
  %vm91 = vcmp.ge.s32.totalorder %v57, 0
  %vm92 = vcmp.ge.s32.totalorder %v58, 0
  %vm93 = vcmp.ge.s32.totalorder %v59, 0
  %vm94 = vcmp.ge.s32.totalorder %v60, 0
  %vm95 = vcmp.ge.s32.totalorder %v61, 0
  %vm96 = vcmp.ge.s32.totalorder %v62, 0
  %vm97 = vcmp.ge.s32.totalorder %v63, 0
  %vm98 = vcmp.ge.s32.totalorder %v64, 0
  %vm99 = vcmp.ge.s32.totalorder %v67, 0
  %vm100 = vcmp.ge.s32.totalorder %v68, 0
  %vm101 = vcmp.ge.s32.totalorder %v69, 0
  %vm102 = vcmp.ge.s32.totalorder %v70, 0
  %vm103 = vcmp.ge.s32.totalorder %v71, 0
  %vm104 = vcmp.ge.s32.totalorder %v72, 0
  %vm105 = vcmp.ge.s32.totalorder %v73, 0
  %vm106 = vcmp.ge.s32.totalorder %v74, 0
  %vm107 = vcmp.ge.s32.totalorder %v75, 0
  %vm108 = vcmp.ge.s32.totalorder %v76, 0
  %vm109 = vcmp.ge.s32.totalorder %v77, 0
  %vm110 = vcmp.ge.s32.totalorder %v78, 0
  %vm111 = vcmp.ge.s32.totalorder %v79, 0
  %vm112 = vcmp.ge.s32.totalorder %v80, 0
  %vm113 = vcmp.ge.s32.totalorder %v81, 0
  %vm114 = vcmp.ge.s32.totalorder %v82, 0
  %vm115 = vmand %vm83, %vm99
  %vm116 = vmand %vm84, %vm100
  %vm117 = vmand %vm85, %vm101
  %vm118 = vmand %vm86, %vm102
  %vm119 = vmand %vm87, %vm103
  %vm120 = vmand %vm88, %vm104
  %vm121 = vmand %vm89, %vm105
  %vm122 = vmand %vm90, %vm106
  %vm123 = vmand %vm91, %vm107
  %vm124 = vmand %vm92, %vm108
  %vm125 = vmand %vm93, %vm109
  %vm126 = vmand %vm94, %vm110
  %vm127 = vmand %vm95, %vm111
  %vm128 = vmand %vm96, %vm112
  %vm129 = vmand %vm97, %vm113
  %vm130 = vmand %vm98, %vm114
  %vm131 = vcmp.lt.s32.totalorder %v67, 1024
  %vm132 = vcmp.lt.s32.totalorder %v68, 1024
  %vm133 = vcmp.lt.s32.totalorder %v69, 1024
  %vm134 = vcmp.lt.s32.totalorder %v70, 1024
  %vm135 = vcmp.lt.s32.totalorder %v71, 1024
  %vm136 = vcmp.lt.s32.totalorder %v72, 1024
  %vm137 = vcmp.lt.s32.totalorder %v73, 1024
  %vm138 = vcmp.lt.s32.totalorder %v74, 1024
  %vm139 = vcmp.lt.s32.totalorder %v75, 1024
  %vm140 = vcmp.lt.s32.totalorder %v76, 1024
  %vm141 = vcmp.lt.s32.totalorder %v77, 1024
  %vm142 = vcmp.lt.s32.totalorder %v78, 1024
  %vm143 = vcmp.lt.s32.totalorder %v79, 1024
  %vm144 = vcmp.lt.s32.totalorder %v80, 1024
  %vm145 = vcmp.lt.s32.totalorder %v81, 1024
  %vm146 = vcmp.lt.s32.totalorder %v82, 1024
  %vm147 = vmand %vm115, %vm131
  %vm148 = vmand %vm116, %vm132
  %vm149 = vmand %vm117, %vm133
  %vm150 = vmand %vm118, %vm134
  %vm151 = vmand %vm119, %vm135
  %vm152 = vmand %vm120, %vm136
  %vm153 = vmand %vm121, %vm137
  %vm154 = vmand %vm122, %vm138
  %vm155 = vmand %vm123, %vm139
  %vm156 = vmand %vm124, %vm140
  %vm157 = vmand %vm125, %vm141
  %vm158 = vmand %vm126, %vm142
  %vm159 = vmand %vm127, %vm143
  %vm160 = vmand %vm128, %vm144
  %vm161 = vmand %vm129, %vm145
  %vm162 = vmand %vm130, %vm146
  %v163 = vshra.s32 %v67, 7
  %v164 = vshra.s32 %v68, 7
  %v165 = vshra.s32 %v69, 7
  %v166 = vshra.s32 %v70, 7
  %v167 = vshra.s32 %v71, 7
  %v168 = vshra.s32 %v72, 7
  %v169 = vshra.s32 %v73, 7
  %v170 = vshra.s32 %v74, 7
  %v171 = vshra.s32 %v75, 7
  %v172 = vshra.s32 %v76, 7
  %v173 = vshra.s32 %v77, 7
  %v174 = vshra.s32 %v78, 7
  %v175 = vshra.s32 %v79, 7
  %v176 = vshra.s32 %v80, 7
  %v177 = vshra.s32 %v81, 7
  %v178 = vshra.s32 %v82, 7
  %v179 = vand.u32 %v67, 127
  %v180 = vand.u32 %v68, 127
  %v181 = vand.u32 %v69, 127
  %v182 = vand.u32 %v70, 127
  %v183 = vand.u32 %v71, 127
  %v184 = vand.u32 %v72, 127
  %v185 = vand.u32 %v73, 127
  %v186 = vand.u32 %v74, 127
  %v187 = vand.u32 %v75, 127
  %v188 = vand.u32 %v76, 127
  %v189 = vand.u32 %v77, 127
  %v190 = vand.u32 %v78, 127
  %v191 = vand.u32 %v79, 127
  %v192 = vand.u32 %v80, 127
  %v193 = vand.u32 %v81, 127
  %v194 = vand.u32 %v82, 127
  %v195 = vlaneseq
  %v196 = vand.u32 %v195, 127
  %197 = vset.pattern.permute.xlu0 0
  %198 = vperm.xlu0 %197, %v163
  %v199 = vpop.permute.xlu0 %198
  %200 = vset.pattern.permute.xlu0 0
  %201 = vperm.xlu0 %200, %v164
  %v202 = vpop.permute.xlu0 %201
  %203 = vset.pattern.permute.xlu0 0
  %204 = vperm.xlu0 %203, %v165
  %v205 = vpop.permute.xlu0 %204
  %206 = vset.pattern.permute.xlu0 0
  %207 = vperm.xlu0 %206, %v166
  %v208 = vpop.permute.xlu0 %207
  %209 = vset.pattern.permute.xlu0 0
  %210 = vperm.xlu0 %209, %v167
  %v211 = vpop.permute.xlu0 %210
  %212 = vset.pattern.permute.xlu0 0
  %213 = vperm.xlu0 %212, %v168
  %v214 = vpop.permute.xlu0 %213
  %215 = vset.pattern.permute.xlu0 0
  %216 = vperm.xlu0 %215, %v169
  %v217 = vpop.permute.xlu0 %216
  %218 = vset.pattern.permute.xlu0 0
  %219 = vperm.xlu0 %218, %v170
  %v220 = vpop.permute.xlu0 %219
  %221 = vset.pattern.permute.xlu0 0
  %222 = vperm.xlu0 %221, %v171
  %v223 = vpop.permute.xlu0 %222
  %224 = vset.pattern.permute.xlu0 0
  %225 = vperm.xlu0 %224, %v172
  %v226 = vpop.permute.xlu0 %225
  %227 = vset.pattern.permute.xlu0 0
  %228 = vperm.xlu0 %227, %v173
  %v229 = vpop.permute.xlu0 %228
  %230 = vset.pattern.permute.xlu0 0
  %231 = vperm.xlu0 %230, %v174
  %v232 = vpop.permute.xlu0 %231
  %233 = vset.pattern.permute.xlu0 0
  %234 = vperm.xlu0 %233, %v175
  %v235 = vpop.permute.xlu0 %234
  %236 = vset.pattern.permute.xlu0 0
  %237 = vperm.xlu0 %236, %v176
  %v238 = vpop.permute.xlu0 %237
  %239 = vset.pattern.permute.xlu0 0
  %240 = vperm.xlu0 %239, %v177
  %v241 = vpop.permute.xlu0 %240
  %242 = vset.pattern.permute.xlu0 0
  %243 = vperm.xlu0 %242, %v178
  %v244 = vpop.permute.xlu0 %243
  %vm245 = vcmp.eq.s32.totalorder %v196, %v199
  %vm246 = vcmp.eq.s32.totalorder %v196, %v202
  %vm247 = vcmp.eq.s32.totalorder %v196, %v205
  %vm248 = vcmp.eq.s32.totalorder %v196, %v208
  %vm249 = vcmp.eq.s32.totalorder %v196, %v211
  %vm250 = vcmp.eq.s32.totalorder %v196, %v214
  %vm251 = vcmp.eq.s32.totalorder %v196, %v217
  %vm252 = vcmp.eq.s32.totalorder %v196, %v220
  %vm253 = vcmp.eq.s32.totalorder %v196, %v223
  %vm254 = vcmp.eq.s32.totalorder %v196, %v226
  %vm255 = vcmp.eq.s32.totalorder %v196, %v229
  %vm256 = vcmp.eq.s32.totalorder %v196, %v232
  %vm257 = vcmp.eq.s32.totalorder %v196, %v235
  %vm258 = vcmp.eq.s32.totalorder %v196, %v238
  %vm259 = vcmp.eq.s32.totalorder %v196, %v241
  %vm260 = vcmp.eq.s32.totalorder %v196, %v244
  %v261 = vsel %vm147, 1, 0
  %v262 = vsel %vm148, 1, 0
  %v263 = vsel %vm149, 1, 0
  %v264 = vsel %vm150, 1, 0
  %v265 = vsel %vm151, 1, 0
  %v266 = vsel %vm152, 1, 0
  %v267 = vsel %vm153, 1, 0
  %v268 = vsel %vm154, 1, 0
  %v269 = vsel %vm155, 1, 0
  %v270 = vsel %vm156, 1, 0
  %v271 = vsel %vm157, 1, 0
  %v272 = vsel %vm158, 1, 0
  %v273 = vsel %vm159, 1, 0
  %v274 = vsel %vm160, 1, 0
  %v275 = vsel %vm161, 1, 0
  %v276 = vsel %vm162, 1, 0
  %277 = vset.pattern.permute.xlu0 0
  %278 = vperm.xlu0 %277, %v261
  %v279 = vpop.permute.xlu0 %278
  %280 = vset.pattern.permute.xlu0 0
  %281 = vperm.xlu0 %280, %v262
  %v282 = vpop.permute.xlu0 %281
  %283 = vset.pattern.permute.xlu0 0
  %284 = vperm.xlu0 %283, %v263
  %v285 = vpop.permute.xlu0 %284
  %286 = vset.pattern.permute.xlu0 0
  %287 = vperm.xlu0 %286, %v264
  %v288 = vpop.permute.xlu0 %287
  %289 = vset.pattern.permute.xlu0 0
  %290 = vperm.xlu0 %289, %v265
  %v291 = vpop.permute.xlu0 %290
  %292 = vset.pattern.permute.xlu0 0
  %293 = vperm.xlu0 %292, %v266
  %v294 = vpop.permute.xlu0 %293
  %295 = vset.pattern.permute.xlu0 0
  %296 = vperm.xlu0 %295, %v267
  %v297 = vpop.permute.xlu0 %296
  %298 = vset.pattern.permute.xlu0 0
  %299 = vperm.xlu0 %298, %v268
  %v300 = vpop.permute.xlu0 %299
  %301 = vset.pattern.permute.xlu0 0
  %302 = vperm.xlu0 %301, %v269
  %v303 = vpop.permute.xlu0 %302
  %304 = vset.pattern.permute.xlu0 0
  %305 = vperm.xlu0 %304, %v270
  %v306 = vpop.permute.xlu0 %305
  %307 = vset.pattern.permute.xlu0 0
  %308 = vperm.xlu0 %307, %v271
  %v309 = vpop.permute.xlu0 %308
  %310 = vset.pattern.permute.xlu0 0
  %311 = vperm.xlu0 %310, %v272
  %v312 = vpop.permute.xlu0 %311
  %313 = vset.pattern.permute.xlu0 0
  %314 = vperm.xlu0 %313, %v273
  %v315 = vpop.permute.xlu0 %314
  %316 = vset.pattern.permute.xlu0 0
  %317 = vperm.xlu0 %316, %v274
  %v318 = vpop.permute.xlu0 %317
  %319 = vset.pattern.permute.xlu0 0
  %320 = vperm.xlu0 %319, %v275
  %v321 = vpop.permute.xlu0 %320
  %322 = vset.pattern.permute.xlu0 0
  %323 = vperm.xlu0 %322, %v276
  %v324 = vpop.permute.xlu0 %323
  %vm325 = vcmp.eq.s32.totalorder %v279, 1
  %vm326 = vcmp.eq.s32.totalorder %v282, 1
  %vm327 = vcmp.eq.s32.totalorder %v285, 1
  %vm328 = vcmp.eq.s32.totalorder %v288, 1
  %vm329 = vcmp.eq.s32.totalorder %v291, 1
  %vm330 = vcmp.eq.s32.totalorder %v294, 1
  %vm331 = vcmp.eq.s32.totalorder %v297, 1
  %vm332 = vcmp.eq.s32.totalorder %v300, 1
  %vm333 = vcmp.eq.s32.totalorder %v303, 1
  %vm334 = vcmp.eq.s32.totalorder %v306, 1
  %vm335 = vcmp.eq.s32.totalorder %v309, 1
  %vm336 = vcmp.eq.s32.totalorder %v312, 1
  %vm337 = vcmp.eq.s32.totalorder %v315, 1
  %vm338 = vcmp.eq.s32.totalorder %v318, 1
  %vm339 = vcmp.eq.s32.totalorder %v321, 1
  %vm340 = vcmp.eq.s32.totalorder %v324, 1
  %vm341 = vmand %vm245, %vm325
  %vm342 = vmand %vm246, %vm326
  %vm343 = vmand %vm247, %vm327
  %vm344 = vmand %vm248, %vm328
  %vm345 = vmand %vm249, %vm329
  %vm346 = vmand %vm250, %vm330
  %vm347 = vmand %vm251, %vm331
  %vm348 = vmand %vm252, %vm332
  %vm349 = vmand %vm253, %vm333
  %vm350 = vmand %vm254, %vm334
  %vm351 = vmand %vm255, %vm335
  %vm352 = vmand %vm256, %vm336
  %vm353 = vmand %vm257, %vm337
  %vm354 = vmand %vm258, %vm338
  %vm355 = vmand %vm259, %vm339
  %vm356 = vmand %vm260, %vm340
  %v357 = vsel %vm341, 1, 0
  %v358 = vsel %vm342, 1, 0
  %v359 = vsel %vm343, 1, 0
  %v360 = vsel %vm344, 1, 0
  %v361 = vsel %vm345, 1, 0
  %v362 = vsel %vm346, 1, 0
  %v363 = vsel %vm347, 1, 0
  %v364 = vsel %vm348, 1, 0
  %v365 = vsel %vm349, 1, 0
  %v366 = vsel %vm350, 1, 0
  %v367 = vsel %vm351, 1, 0
  %v368 = vsel %vm352, 1, 0
  %v369 = vsel %vm353, 1, 0
  %v370 = vsel %vm354, 1, 0
  %v371 = vsel %vm355, 1, 0
  %v372 = vsel %vm356, 1, 0
  %v373 = vcvt.s32.f32 %v357
  %v374 = vcvt.s32.f32 %v358
  %v375 = vcvt.s32.f32 %v359
  %v376 = vcvt.s32.f32 %v360
  %v377 = vcvt.s32.f32 %v361
  %v378 = vcvt.s32.f32 %v362
  %v379 = vcvt.s32.f32 %v363
  %v380 = vcvt.s32.f32 %v364
  %v381 = vcvt.s32.f32 %v365
  %v382 = vcvt.s32.f32 %v366
  %v383 = vcvt.s32.f32 %v367
  %v384 = vcvt.s32.f32 %v368
  %v385 = vcvt.s32.f32 %v369
  %v386 = vcvt.s32.f32 %v370
  %v387 = vcvt.s32.f32 %v371
  %v388 = vcvt.s32.f32 %v372
  %v389 = vpack.c.bf16 %v374, %v373
  %v390 = vpack.c.bf16 %v376, %v375
  %v391 = vpack.c.bf16 %v378, %v377
  %v392 = vpack.c.bf16 %v380, %v379
  %v393 = vpack.c.bf16 %v382, %v381
  %v394 = vpack.c.bf16 %v384, %v383
  %v395 = vpack.c.bf16 %v386, %v385
  %v396 = vpack.c.bf16 %v388, %v387
  %397 = vset.pattern.permute.xlu0 0
  %398 = vperm.xlu0 %397, %v179
  %v399 = vpop.permute.xlu0 %398
  %400 = vset.pattern.permute.xlu0 0
  %401 = vperm.xlu0 %400, %v180
  %v402 = vpop.permute.xlu0 %401
  %403 = vset.pattern.permute.xlu0 0
  %404 = vperm.xlu0 %403, %v181
  %v405 = vpop.permute.xlu0 %404
  %406 = vset.pattern.permute.xlu0 0
  %407 = vperm.xlu0 %406, %v182
  %v408 = vpop.permute.xlu0 %407
  %409 = vset.pattern.permute.xlu0 0
  %410 = vperm.xlu0 %409, %v183
  %v411 = vpop.permute.xlu0 %410
  %412 = vset.pattern.permute.xlu0 0
  %413 = vperm.xlu0 %412, %v184
  %v414 = vpop.permute.xlu0 %413
  %415 = vset.pattern.permute.xlu0 0
  %416 = vperm.xlu0 %415, %v185
  %v417 = vpop.permute.xlu0 %416
  %418 = vset.pattern.permute.xlu0 0
  %419 = vperm.xlu0 %418, %v186
  %v420 = vpop.permute.xlu0 %419
  %421 = vset.pattern.permute.xlu0 0
  %422 = vperm.xlu0 %421, %v187
  %v423 = vpop.permute.xlu0 %422
  %424 = vset.pattern.permute.xlu0 0
  %425 = vperm.xlu0 %424, %v188
  %v426 = vpop.permute.xlu0 %425
  %427 = vset.pattern.permute.xlu0 0
  %428 = vperm.xlu0 %427, %v189
  %v429 = vpop.permute.xlu0 %428
  %430 = vset.pattern.permute.xlu0 0
  %431 = vperm.xlu0 %430, %v190
  %v432 = vpop.permute.xlu0 %431
  %433 = vset.pattern.permute.xlu0 0
  %434 = vperm.xlu0 %433, %v191
  %v435 = vpop.permute.xlu0 %434
  %436 = vset.pattern.permute.xlu0 0
  %437 = vperm.xlu0 %436, %v192
  %v438 = vpop.permute.xlu0 %437
  %439 = vset.pattern.permute.xlu0 0
  %440 = vperm.xlu0 %439, %v193
  %v441 = vpop.permute.xlu0 %440
  %442 = vset.pattern.permute.xlu0 0
  %443 = vperm.xlu0 %442, %v194
  %v444 = vpop.permute.xlu0 %443
  %vm445 = vcmp.eq.s32.totalorder %v196, %v399
  %vm446 = vcmp.eq.s32.totalorder %v196, %v402
  %vm447 = vcmp.eq.s32.totalorder %v196, %v405
  %vm448 = vcmp.eq.s32.totalorder %v196, %v408
  %vm449 = vcmp.eq.s32.totalorder %v196, %v411
  %vm450 = vcmp.eq.s32.totalorder %v196, %v414
  %vm451 = vcmp.eq.s32.totalorder %v196, %v417
  %vm452 = vcmp.eq.s32.totalorder %v196, %v420
  %vm453 = vcmp.eq.s32.totalorder %v196, %v423
  %vm454 = vcmp.eq.s32.totalorder %v196, %v426
  %vm455 = vcmp.eq.s32.totalorder %v196, %v429
  %vm456 = vcmp.eq.s32.totalorder %v196, %v432
  %vm457 = vcmp.eq.s32.totalorder %v196, %v435
  %vm458 = vcmp.eq.s32.totalorder %v196, %v438
  %vm459 = vcmp.eq.s32.totalorder %v196, %v441
  %vm460 = vcmp.eq.s32.totalorder %v196, %v444
  %v461 = vld [vmem:[%s2] sm:$0xff]
  %v462 = vpack.c.bf16 %v461, %v461
  %vm463 = vcmask 64512
  %v465 = vsel %vm463, %v389, 0
  %v468 = vsel %vm463, %v390, 0
  %v471 = vsel %vm463, %v391, 0
  %v474 = vsel %vm463, %v392, 0
  %v477 = vsel %vm463, %v393, 0
  %v480 = vsel %vm463, %v394, 0
  %v483 = vsel %vm463, %v395, 0
  %v486 = vsel %vm463, %v396, 0
  %vm488 = vcmask 1043456
  %v490 = vsel %vm488, %v462, 0
  %492 = vmatprep.subr.bf16.mxu0 0
  %493 = vmatpush1.bf16.msra.mxu0 0
  %494 = vmatprep.subr.bf16.mxu0 0
  %495 = vmatpush1.bf16.msra.mxu0 0
  %496 = vmatprep.subr.bf16.mxu0 0
  %497 = vmatpush1.bf16.msra.mxu0 0
  %498 = vmatprep.subr.bf16.mxu0 0
  %499 = vmatpush1.bf16.msra.mxu0 0
  %500 = vmatprep.subr.bf16.mxu0 0
  %501 = vmatpush1.bf16.msra.mxu0 0
  %502 = vmatprep.subr.bf16.mxu0 0
  %503 = vmatpush1.bf16.msra.mxu0 0
  %504 = vmatprep.subr.bf16.mxu0 0
  %505 = vmatpush1.bf16.msra.mxu0 0
  %506 = vmatprep.subr.bf16.mxu0 0
  %507 = vmatpush1.bf16.msra.mxu0 %v490
  %508 = vmatprep.subr.bf16.mxu0 0
  %509 = vmatpush2.bf16.msra.mxu0 0
  %510 = vmatprep.subr.bf16.mxu0 0
  %511 = vmatpush2.bf16.msra.mxu0 0
  %512 = vmatprep.subr.bf16.mxu0 0
  %513 = vmatpush2.bf16.msra.mxu0 0
  %514 = vmatprep.subr.bf16.mxu0 0
  %515 = vmatpush2.bf16.msra.mxu0 0
  %516 = vmatprep.subr.bf16.mxu0 0
  %517 = vmatpush2.bf16.msra.mxu0 0
  %518 = vmatprep.subr.bf16.mxu0 0
  %519 = vmatpush2.bf16.msra.mxu0 0
  %520 = vmatprep.subr.bf16.mxu0 0
  %521 = vmatpush2.bf16.msra.mxu0 0
  %522 = vmatprep.subr.bf16.mxu0 0
  %523 = vmatpush2.bf16.msra.mxu0 0
  %524 = vmatprep.mubr.bf16.mxu0 0
  %525 = vmatmul.mubr.bf16.gmra.mxu0 %v465
  %v526 = vpop.f32.mrf.mxu0
  %v527 = vadd.f32 0.0, %v526
  %v528 = vpop.f32.mrf.mxu0
  %v529 = vpop.f32.mrf.mxu0
  %v530 = vadd.f32 0.0, %v529
  %v531 = vpop.f32.mrf.mxu0
  %532 = vmatprep.mubr.bf16.mxu0 0
  %533 = vmatmul.mubr.bf16.gmra.mxu0 %v468
  %v534 = vpop.f32.mrf.mxu0
  %v535 = vadd.f32 0.0, %v534
  %v536 = vpop.f32.mrf.mxu0
  %v537 = vpop.f32.mrf.mxu0
  %v538 = vadd.f32 0.0, %v537
  %v539 = vpop.f32.mrf.mxu0
  %540 = vmatprep.mubr.bf16.mxu0 0
  %541 = vmatmul.mubr.bf16.gmra.mxu0 %v471
  %v542 = vpop.f32.mrf.mxu0
  %v543 = vadd.f32 0.0, %v542
  %v544 = vpop.f32.mrf.mxu0
  %v545 = vpop.f32.mrf.mxu0
  %v546 = vadd.f32 0.0, %v545
  %v547 = vpop.f32.mrf.mxu0
  %548 = vmatprep.mubr.bf16.mxu0 0
  %549 = vmatmul.mubr.bf16.gmra.mxu0 %v474
  %v550 = vpop.f32.mrf.mxu0
  %v551 = vadd.f32 0.0, %v550
  %v552 = vpop.f32.mrf.mxu0
  %v553 = vpop.f32.mrf.mxu0
  %v554 = vadd.f32 0.0, %v553
  %v555 = vpop.f32.mrf.mxu0
  %556 = vmatprep.mubr.bf16.mxu0 0
  %557 = vmatmul.mubr.bf16.gmra.mxu0 %v477
  %v558 = vpop.f32.mrf.mxu0
  %v559 = vadd.f32 0.0, %v558
  %v560 = vpop.f32.mrf.mxu0
  %v561 = vpop.f32.mrf.mxu0
  %v562 = vadd.f32 0.0, %v561
  %v563 = vpop.f32.mrf.mxu0
  %564 = vmatprep.mubr.bf16.mxu0 0
  %565 = vmatmul.mubr.bf16.gmra.mxu0 %v480
  %v566 = vpop.f32.mrf.mxu0
  %v567 = vadd.f32 0.0, %v566
  %v568 = vpop.f32.mrf.mxu0
  %v569 = vpop.f32.mrf.mxu0
  %v570 = vadd.f32 0.0, %v569
  %v571 = vpop.f32.mrf.mxu0
  %572 = vmatprep.mubr.bf16.mxu0 0
  %573 = vmatmul.mubr.bf16.gmra.mxu0 %v483
  %v574 = vpop.f32.mrf.mxu0
  %v575 = vadd.f32 0.0, %v574
  %v576 = vpop.f32.mrf.mxu0
  %v577 = vpop.f32.mrf.mxu0
  %v578 = vadd.f32 0.0, %v577
  %v579 = vpop.f32.mrf.mxu0
  %580 = vmatprep.mubr.bf16.mxu0 0
  %581 = vmatmul.mubr.bf16.gmra.mxu0 %v486
  %v582 = vpop.f32.mrf.mxu0
  %v583 = vadd.f32 0.0, %v582
  %v584 = vpop.f32.mrf.mxu0
  %v585 = vpop.f32.mrf.mxu0
  %v586 = vadd.f32 0.0, %v585
  %v587 = vpop.f32.mrf.mxu0
  %588 = vdwg.mxu0
  %v589 = vsel %vm445, %v527, 0.0
  %v590 = vsel %vm446, %v530, 0.0
  %v591 = vsel %vm447, %v535, 0.0
  %v592 = vsel %vm448, %v538, 0.0
  %v593 = vsel %vm449, %v543, 0.0
  %v594 = vsel %vm450, %v546, 0.0
  %v595 = vsel %vm451, %v551, 0.0
  %v596 = vsel %vm452, %v554, 0.0
  %v597 = vsel %vm453, %v559, 0.0
  %v598 = vsel %vm454, %v562, 0.0
  %v599 = vsel %vm455, %v567, 0.0
  %v600 = vsel %vm456, %v570, 0.0
  %v601 = vsel %vm457, %v575, 0.0
  %v602 = vsel %vm458, %v578, 0.0
  %v603 = vsel %vm459, %v583, 0.0
  %v604 = vsel %vm460, %v586, 0.0
  %605 = vadd.xlane.f32.xlu0 %v589
  %v606 = vpop.xlane.xlu0 %605
  %607 = vadd.xlane.f32.xlu0 %v590
  %v608 = vpop.xlane.xlu0 %607
  %609 = vadd.xlane.f32.xlu0 %v591
  %v610 = vpop.xlane.xlu0 %609
  %611 = vadd.xlane.f32.xlu0 %v592
  %v612 = vpop.xlane.xlu0 %611
  %613 = vadd.xlane.f32.xlu0 %v593
  %v614 = vpop.xlane.xlu0 %613
  %615 = vadd.xlane.f32.xlu0 %v594
  %v616 = vpop.xlane.xlu0 %615
  %617 = vadd.xlane.f32.xlu0 %v595
  %v618 = vpop.xlane.xlu0 %617
  %619 = vadd.xlane.f32.xlu0 %v596
  %v620 = vpop.xlane.xlu0 %619
  %621 = vadd.xlane.f32.xlu0 %v597
  %v622 = vpop.xlane.xlu0 %621
  %623 = vadd.xlane.f32.xlu0 %v598
  %v624 = vpop.xlane.xlu0 %623
  %625 = vadd.xlane.f32.xlu0 %v599
  %v626 = vpop.xlane.xlu0 %625
  %627 = vadd.xlane.f32.xlu0 %v600
  %v628 = vpop.xlane.xlu0 %627
  %629 = vadd.xlane.f32.xlu0 %v601
  %v630 = vpop.xlane.xlu0 %629
  %631 = vadd.xlane.f32.xlu0 %v602
  %v632 = vpop.xlane.xlu0 %631
  %633 = vadd.xlane.f32.xlu0 %v603
  %v634 = vpop.xlane.xlu0 %633
  %635 = vadd.xlane.f32.xlu0 %v604
  %v636 = vpop.xlane.xlu0 %635
  %s637 = scalar_lea.vmem %s2, 8
  %v638 = vld [vmem:[%s637] sm:$0xff]
  %v639 = vpack.c.bf16 %v638, %v638
  %v641 = vsel %vm488, %v639, 0
  %643 = vmatprep.subr.bf16.mxu0 0
  %644 = vmatpush1.bf16.msra.mxu0 0
  %645 = vmatprep.subr.bf16.mxu0 0
  %646 = vmatpush1.bf16.msra.mxu0 0
  %647 = vmatprep.subr.bf16.mxu0 0
  %648 = vmatpush1.bf16.msra.mxu0 0
  %649 = vmatprep.subr.bf16.mxu0 0
  %650 = vmatpush1.bf16.msra.mxu0 0
  %651 = vmatprep.subr.bf16.mxu0 0
  %652 = vmatpush1.bf16.msra.mxu0 0
  %653 = vmatprep.subr.bf16.mxu0 0
  %654 = vmatpush1.bf16.msra.mxu0 0
  %655 = vmatprep.subr.bf16.mxu0 0
  %656 = vmatpush1.bf16.msra.mxu0 0
  %657 = vmatprep.subr.bf16.mxu0 0
  %658 = vmatpush1.bf16.msra.mxu0 %v641
  %659 = vmatprep.subr.bf16.mxu0 0
  %660 = vmatpush2.bf16.msra.mxu0 0
  %661 = vmatprep.subr.bf16.mxu0 0
  %662 = vmatpush2.bf16.msra.mxu0 0
  %663 = vmatprep.subr.bf16.mxu0 0
  %664 = vmatpush2.bf16.msra.mxu0 0
  %665 = vmatprep.subr.bf16.mxu0 0
  %666 = vmatpush2.bf16.msra.mxu0 0
  %667 = vmatprep.subr.bf16.mxu0 0
  %668 = vmatpush2.bf16.msra.mxu0 0
  %669 = vmatprep.subr.bf16.mxu0 0
  %670 = vmatpush2.bf16.msra.mxu0 0
  %671 = vmatprep.subr.bf16.mxu0 0
  %672 = vmatpush2.bf16.msra.mxu0 0
  %673 = vmatprep.subr.bf16.mxu0 0
  %674 = vmatpush2.bf16.msra.mxu0 0
  %675 = vmatprep.mubr.bf16.mxu0 0
  %676 = vmatmul.mubr.bf16.gmra.mxu0 %v465
  %v677 = vpop.f32.mrf.mxu0
  %v678 = vadd.f32 0.0, %v677
  %v679 = vpop.f32.mrf.mxu0
  %v680 = vpop.f32.mrf.mxu0
  %v681 = vadd.f32 0.0, %v680
  %v682 = vpop.f32.mrf.mxu0
  %683 = vmatprep.mubr.bf16.mxu0 0
  %684 = vmatmul.mubr.bf16.gmra.mxu0 %v468
  %v685 = vpop.f32.mrf.mxu0
  %v686 = vadd.f32 0.0, %v685
  %v687 = vpop.f32.mrf.mxu0
  %v688 = vpop.f32.mrf.mxu0
  %v689 = vadd.f32 0.0, %v688
  %v690 = vpop.f32.mrf.mxu0
  %691 = vmatprep.mubr.bf16.mxu0 0
  %692 = vmatmul.mubr.bf16.gmra.mxu0 %v471
  %v693 = vpop.f32.mrf.mxu0
  %v694 = vadd.f32 0.0, %v693
  %v695 = vpop.f32.mrf.mxu0
  %v696 = vpop.f32.mrf.mxu0
  %v697 = vadd.f32 0.0, %v696
  %v698 = vpop.f32.mrf.mxu0
  %699 = vmatprep.mubr.bf16.mxu0 0
  %700 = vmatmul.mubr.bf16.gmra.mxu0 %v474
  %v701 = vpop.f32.mrf.mxu0
  %v702 = vadd.f32 0.0, %v701
  %v703 = vpop.f32.mrf.mxu0
  %v704 = vpop.f32.mrf.mxu0
  %v705 = vadd.f32 0.0, %v704
  %v706 = vpop.f32.mrf.mxu0
  %707 = vmatprep.mubr.bf16.mxu0 0
  %708 = vmatmul.mubr.bf16.gmra.mxu0 %v477
  %v709 = vpop.f32.mrf.mxu0
  %v710 = vadd.f32 0.0, %v709
  %v711 = vpop.f32.mrf.mxu0
  %v712 = vpop.f32.mrf.mxu0
  %v713 = vadd.f32 0.0, %v712
  %v714 = vpop.f32.mrf.mxu0
  %715 = vmatprep.mubr.bf16.mxu0 0
  %716 = vmatmul.mubr.bf16.gmra.mxu0 %v480
  %v717 = vpop.f32.mrf.mxu0
  %v718 = vadd.f32 0.0, %v717
  %v719 = vpop.f32.mrf.mxu0
  %v720 = vpop.f32.mrf.mxu0
  %v721 = vadd.f32 0.0, %v720
  %v722 = vpop.f32.mrf.mxu0
  %723 = vmatprep.mubr.bf16.mxu0 0
  %724 = vmatmul.mubr.bf16.gmra.mxu0 %v483
  %v725 = vpop.f32.mrf.mxu0
  %v726 = vadd.f32 0.0, %v725
  %v727 = vpop.f32.mrf.mxu0
  %v728 = vpop.f32.mrf.mxu0
  %v729 = vadd.f32 0.0, %v728
  %v730 = vpop.f32.mrf.mxu0
  %731 = vmatprep.mubr.bf16.mxu0 0
  %732 = vmatmul.mubr.bf16.gmra.mxu0 %v486
  %v733 = vpop.f32.mrf.mxu0
  %v734 = vadd.f32 0.0, %v733
  %v735 = vpop.f32.mrf.mxu0
  %v736 = vpop.f32.mrf.mxu0
  %v737 = vadd.f32 0.0, %v736
  %v738 = vpop.f32.mrf.mxu0
  %739 = vdwg.mxu0
  %v740 = vsel %vm445, %v678, 0.0
  %v741 = vsel %vm446, %v681, 0.0
  %v742 = vsel %vm447, %v686, 0.0
  %v743 = vsel %vm448, %v689, 0.0
  %v744 = vsel %vm449, %v694, 0.0
  %v745 = vsel %vm450, %v697, 0.0
  %v746 = vsel %vm451, %v702, 0.0
  %v747 = vsel %vm452, %v705, 0.0
  %v748 = vsel %vm453, %v710, 0.0
  %v749 = vsel %vm454, %v713, 0.0
  %v750 = vsel %vm455, %v718, 0.0
  %v751 = vsel %vm456, %v721, 0.0
  %v752 = vsel %vm457, %v726, 0.0
  %v753 = vsel %vm458, %v729, 0.0
  %v754 = vsel %vm459, %v734, 0.0
  %v755 = vsel %vm460, %v737, 0.0
  %756 = vadd.xlane.f32.xlu0 %v740
  %v757 = vpop.xlane.xlu0 %756
  %758 = vadd.xlane.f32.xlu0 %v741
  %v759 = vpop.xlane.xlu0 %758
  %760 = vadd.xlane.f32.xlu0 %v742
  %v761 = vpop.xlane.xlu0 %760
  %762 = vadd.xlane.f32.xlu0 %v743
  %v763 = vpop.xlane.xlu0 %762
  %764 = vadd.xlane.f32.xlu0 %v744
  %v765 = vpop.xlane.xlu0 %764
  %766 = vadd.xlane.f32.xlu0 %v745
  %v767 = vpop.xlane.xlu0 %766
  %768 = vadd.xlane.f32.xlu0 %v746
  %v769 = vpop.xlane.xlu0 %768
  %770 = vadd.xlane.f32.xlu0 %v747
  %v771 = vpop.xlane.xlu0 %770
  %772 = vadd.xlane.f32.xlu0 %v748
  %v773 = vpop.xlane.xlu0 %772
  %774 = vadd.xlane.f32.xlu0 %v749
  %v775 = vpop.xlane.xlu0 %774
  %776 = vadd.xlane.f32.xlu0 %v750
  %v777 = vpop.xlane.xlu0 %776
  %778 = vadd.xlane.f32.xlu0 %v751
  %v779 = vpop.xlane.xlu0 %778
  %780 = vadd.xlane.f32.xlu0 %v752
  %v781 = vpop.xlane.xlu0 %780
  %782 = vadd.xlane.f32.xlu0 %v753
  %v783 = vpop.xlane.xlu0 %782
  %784 = vadd.xlane.f32.xlu0 %v754
  %v785 = vpop.xlane.xlu0 %784
  %786 = vadd.xlane.f32.xlu0 %v755
  %v787 = vpop.xlane.xlu0 %786
  %s788 = scalar_lea.vmem %s2, 16
  %v789 = vld [vmem:[%s788] sm:$0xff]
  %v790 = vpack.c.bf16 %v789, %v789
  %v792 = vsel %vm488, %v790, 0
  %794 = vmatprep.subr.bf16.mxu0 0
  %795 = vmatpush1.bf16.msra.mxu0 0
  %796 = vmatprep.subr.bf16.mxu0 0
  %797 = vmatpush1.bf16.msra.mxu0 0
  %798 = vmatprep.subr.bf16.mxu0 0
  %799 = vmatpush1.bf16.msra.mxu0 0
  %800 = vmatprep.subr.bf16.mxu0 0
  %801 = vmatpush1.bf16.msra.mxu0 0
  %802 = vmatprep.subr.bf16.mxu0 0
  %803 = vmatpush1.bf16.msra.mxu0 0
  %804 = vmatprep.subr.bf16.mxu0 0
  %805 = vmatpush1.bf16.msra.mxu0 0
  %806 = vmatprep.subr.bf16.mxu0 0
  %807 = vmatpush1.bf16.msra.mxu0 0
  %808 = vmatprep.subr.bf16.mxu0 0
  %809 = vmatpush1.bf16.msra.mxu0 %v792
  %810 = vmatprep.subr.bf16.mxu0 0
  %811 = vmatpush2.bf16.msra.mxu0 0
  %812 = vmatprep.subr.bf16.mxu0 0
  %813 = vmatpush2.bf16.msra.mxu0 0
  %814 = vmatprep.subr.bf16.mxu0 0
  %815 = vmatpush2.bf16.msra.mxu0 0
  %816 = vmatprep.subr.bf16.mxu0 0
  %817 = vmatpush2.bf16.msra.mxu0 0
  %818 = vmatprep.subr.bf16.mxu0 0
  %819 = vmatpush2.bf16.msra.mxu0 0
  %820 = vmatprep.subr.bf16.mxu0 0
  %821 = vmatpush2.bf16.msra.mxu0 0
  %822 = vmatprep.subr.bf16.mxu0 0
  %823 = vmatpush2.bf16.msra.mxu0 0
  %824 = vmatprep.subr.bf16.mxu0 0
  %825 = vmatpush2.bf16.msra.mxu0 0
  %826 = vmatprep.mubr.bf16.mxu0 0
  %827 = vmatmul.mubr.bf16.gmra.mxu0 %v465
  %v828 = vpop.f32.mrf.mxu0
  %v829 = vadd.f32 0.0, %v828
  %v830 = vpop.f32.mrf.mxu0
  %v831 = vpop.f32.mrf.mxu0
  %v832 = vadd.f32 0.0, %v831
  %v833 = vpop.f32.mrf.mxu0
  %834 = vmatprep.mubr.bf16.mxu0 0
  %835 = vmatmul.mubr.bf16.gmra.mxu0 %v468
  %v836 = vpop.f32.mrf.mxu0
  %v837 = vadd.f32 0.0, %v836
  %v838 = vpop.f32.mrf.mxu0
  %v839 = vpop.f32.mrf.mxu0
  %v840 = vadd.f32 0.0, %v839
  %v841 = vpop.f32.mrf.mxu0
  %842 = vmatprep.mubr.bf16.mxu0 0
  %843 = vmatmul.mubr.bf16.gmra.mxu0 %v471
  %v844 = vpop.f32.mrf.mxu0
  %v845 = vadd.f32 0.0, %v844
  %v846 = vpop.f32.mrf.mxu0
  %v847 = vpop.f32.mrf.mxu0
  %v848 = vadd.f32 0.0, %v847
  %v849 = vpop.f32.mrf.mxu0
  %850 = vmatprep.mubr.bf16.mxu0 0
  %851 = vmatmul.mubr.bf16.gmra.mxu0 %v474
  %v852 = vpop.f32.mrf.mxu0
  %v853 = vadd.f32 0.0, %v852
  %v854 = vpop.f32.mrf.mxu0
  %v855 = vpop.f32.mrf.mxu0
  %v856 = vadd.f32 0.0, %v855
  %v857 = vpop.f32.mrf.mxu0
  %858 = vmatprep.mubr.bf16.mxu0 0
  %859 = vmatmul.mubr.bf16.gmra.mxu0 %v477
  %v860 = vpop.f32.mrf.mxu0
  %v861 = vadd.f32 0.0, %v860
  %v862 = vpop.f32.mrf.mxu0
  %v863 = vpop.f32.mrf.mxu0
  %v864 = vadd.f32 0.0, %v863
  %v865 = vpop.f32.mrf.mxu0
  %866 = vmatprep.mubr.bf16.mxu0 0
  %867 = vmatmul.mubr.bf16.gmra.mxu0 %v480
  %v868 = vpop.f32.mrf.mxu0
  %v869 = vadd.f32 0.0, %v868
  %v870 = vpop.f32.mrf.mxu0
  %v871 = vpop.f32.mrf.mxu0
  %v872 = vadd.f32 0.0, %v871
  %v873 = vpop.f32.mrf.mxu0
  %874 = vmatprep.mubr.bf16.mxu0 0
  %875 = vmatmul.mubr.bf16.gmra.mxu0 %v483
  %v876 = vpop.f32.mrf.mxu0
  %v877 = vadd.f32 0.0, %v876
  %v878 = vpop.f32.mrf.mxu0
  %v879 = vpop.f32.mrf.mxu0
  %v880 = vadd.f32 0.0, %v879
  %v881 = vpop.f32.mrf.mxu0
  %882 = vmatprep.mubr.bf16.mxu0 0
  %883 = vmatmul.mubr.bf16.gmra.mxu0 %v486
  %v884 = vpop.f32.mrf.mxu0
  %v885 = vadd.f32 0.0, %v884
  %v886 = vpop.f32.mrf.mxu0
  %v887 = vpop.f32.mrf.mxu0
  %v888 = vadd.f32 0.0, %v887
  %v889 = vpop.f32.mrf.mxu0
  %890 = vdwg.mxu0
  %v891 = vsel %vm445, %v829, 0.0
  %v892 = vsel %vm446, %v832, 0.0
  %v893 = vsel %vm447, %v837, 0.0
  %v894 = vsel %vm448, %v840, 0.0
  %v895 = vsel %vm449, %v845, 0.0
  %v896 = vsel %vm450, %v848, 0.0
  %v897 = vsel %vm451, %v853, 0.0
  %v898 = vsel %vm452, %v856, 0.0
  %v899 = vsel %vm453, %v861, 0.0
  %v900 = vsel %vm454, %v864, 0.0
  %v901 = vsel %vm455, %v869, 0.0
  %v902 = vsel %vm456, %v872, 0.0
  %v903 = vsel %vm457, %v877, 0.0
  %v904 = vsel %vm458, %v880, 0.0
  %v905 = vsel %vm459, %v885, 0.0
  %v906 = vsel %vm460, %v888, 0.0
  %907 = vadd.xlane.f32.xlu0 %v891
  %v908 = vpop.xlane.xlu0 %907
  %909 = vadd.xlane.f32.xlu0 %v892
  %v910 = vpop.xlane.xlu0 %909
  %911 = vadd.xlane.f32.xlu0 %v893
  %v912 = vpop.xlane.xlu0 %911
  %913 = vadd.xlane.f32.xlu0 %v894
  %v914 = vpop.xlane.xlu0 %913
  %915 = vadd.xlane.f32.xlu0 %v895
  %v916 = vpop.xlane.xlu0 %915
  %917 = vadd.xlane.f32.xlu0 %v896
  %v918 = vpop.xlane.xlu0 %917
  %919 = vadd.xlane.f32.xlu0 %v897
  %v920 = vpop.xlane.xlu0 %919
  %921 = vadd.xlane.f32.xlu0 %v898
  %v922 = vpop.xlane.xlu0 %921
  %923 = vadd.xlane.f32.xlu0 %v899
  %v924 = vpop.xlane.xlu0 %923
  %925 = vadd.xlane.f32.xlu0 %v900
  %v926 = vpop.xlane.xlu0 %925
  %927 = vadd.xlane.f32.xlu0 %v901
  %v928 = vpop.xlane.xlu0 %927
  %929 = vadd.xlane.f32.xlu0 %v902
  %v930 = vpop.xlane.xlu0 %929
  %931 = vadd.xlane.f32.xlu0 %v903
  %v932 = vpop.xlane.xlu0 %931
  %933 = vadd.xlane.f32.xlu0 %v904
  %v934 = vpop.xlane.xlu0 %933
  %935 = vadd.xlane.f32.xlu0 %v905
  %v936 = vpop.xlane.xlu0 %935
  %937 = vadd.xlane.f32.xlu0 %v906
  %v938 = vpop.xlane.xlu0 %937
  %s939 = scalar_lea.vmem %s2, 24
  %v940 = vld [vmem:[%s939] sm:$0xff]
  %v941 = vpack.c.bf16 %v940, %v940
  %v943 = vsel %vm488, %v941, 0
  %945 = vmatprep.subr.bf16.mxu0 0
  %946 = vmatpush1.bf16.msra.mxu0 0
  %947 = vmatprep.subr.bf16.mxu0 0
  %948 = vmatpush1.bf16.msra.mxu0 0
  %949 = vmatprep.subr.bf16.mxu0 0
  %950 = vmatpush1.bf16.msra.mxu0 0
  %951 = vmatprep.subr.bf16.mxu0 0
  %952 = vmatpush1.bf16.msra.mxu0 0
  %953 = vmatprep.subr.bf16.mxu0 0
  %954 = vmatpush1.bf16.msra.mxu0 0
  %955 = vmatprep.subr.bf16.mxu0 0
  %956 = vmatpush1.bf16.msra.mxu0 0
  %957 = vmatprep.subr.bf16.mxu0 0
  %958 = vmatpush1.bf16.msra.mxu0 0
  %959 = vmatprep.subr.bf16.mxu0 0
  %960 = vmatpush1.bf16.msra.mxu0 %v943
  %961 = vmatprep.subr.bf16.mxu0 0
  %962 = vmatpush2.bf16.msra.mxu0 0
  %963 = vmatprep.subr.bf16.mxu0 0
  %964 = vmatpush2.bf16.msra.mxu0 0
  %965 = vmatprep.subr.bf16.mxu0 0
  %966 = vmatpush2.bf16.msra.mxu0 0
  %967 = vmatprep.subr.bf16.mxu0 0
  %968 = vmatpush2.bf16.msra.mxu0 0
  %969 = vmatprep.subr.bf16.mxu0 0
  %970 = vmatpush2.bf16.msra.mxu0 0
  %971 = vmatprep.subr.bf16.mxu0 0
  %972 = vmatpush2.bf16.msra.mxu0 0
  %973 = vmatprep.subr.bf16.mxu0 0
  %974 = vmatpush2.bf16.msra.mxu0 0
  %975 = vmatprep.subr.bf16.mxu0 0
  %976 = vmatpush2.bf16.msra.mxu0 0
  %977 = vmatprep.mubr.bf16.mxu0 0
  %978 = vmatmul.mubr.bf16.gmra.mxu0 %v465
  %v979 = vpop.f32.mrf.mxu0
  %v980 = vadd.f32 0.0, %v979
  %v981 = vpop.f32.mrf.mxu0
  %v982 = vpop.f32.mrf.mxu0
  %v983 = vadd.f32 0.0, %v982
  %v984 = vpop.f32.mrf.mxu0
  %985 = vmatprep.mubr.bf16.mxu0 0
  %986 = vmatmul.mubr.bf16.gmra.mxu0 %v468
  %v987 = vpop.f32.mrf.mxu0
  %v988 = vadd.f32 0.0, %v987
  %v989 = vpop.f32.mrf.mxu0
  %v990 = vpop.f32.mrf.mxu0
  %v991 = vadd.f32 0.0, %v990
  %v992 = vpop.f32.mrf.mxu0
  %993 = vmatprep.mubr.bf16.mxu0 0
  %994 = vmatmul.mubr.bf16.gmra.mxu0 %v471
  %v995 = vpop.f32.mrf.mxu0
  %v996 = vadd.f32 0.0, %v995
  %v997 = vpop.f32.mrf.mxu0
  %v998 = vpop.f32.mrf.mxu0
  %v999 = vadd.f32 0.0, %v998
  %v1000 = vpop.f32.mrf.mxu0
  %1001 = vmatprep.mubr.bf16.mxu0 0
  %1002 = vmatmul.mubr.bf16.gmra.mxu0 %v474
  %v1003 = vpop.f32.mrf.mxu0
  %v1004 = vadd.f32 0.0, %v1003
  %v1005 = vpop.f32.mrf.mxu0
  %v1006 = vpop.f32.mrf.mxu0
  %v1007 = vadd.f32 0.0, %v1006
  %v1008 = vpop.f32.mrf.mxu0
  %1009 = vmatprep.mubr.bf16.mxu0 0
  %1010 = vmatmul.mubr.bf16.gmra.mxu0 %v477
  %v1011 = vpop.f32.mrf.mxu0
  %v1012 = vadd.f32 0.0, %v1011
  %v1013 = vpop.f32.mrf.mxu0
  %v1014 = vpop.f32.mrf.mxu0
  %v1015 = vadd.f32 0.0, %v1014
  %v1016 = vpop.f32.mrf.mxu0
  %1017 = vmatprep.mubr.bf16.mxu0 0
  %1018 = vmatmul.mubr.bf16.gmra.mxu0 %v480
  %v1019 = vpop.f32.mrf.mxu0
  %v1020 = vadd.f32 0.0, %v1019
  %v1021 = vpop.f32.mrf.mxu0
  %v1022 = vpop.f32.mrf.mxu0
  %v1023 = vadd.f32 0.0, %v1022
  %v1024 = vpop.f32.mrf.mxu0
  %1025 = vmatprep.mubr.bf16.mxu0 0
  %1026 = vmatmul.mubr.bf16.gmra.mxu0 %v483
  %v1027 = vpop.f32.mrf.mxu0
  %v1028 = vadd.f32 0.0, %v1027
  %v1029 = vpop.f32.mrf.mxu0
  %v1030 = vpop.f32.mrf.mxu0
  %v1031 = vadd.f32 0.0, %v1030
  %v1032 = vpop.f32.mrf.mxu0
  %1033 = vmatprep.mubr.bf16.mxu0 0
  %1034 = vmatmul.mubr.bf16.gmra.mxu0 %v486
  %v1035 = vpop.f32.mrf.mxu0
  %v1036 = vadd.f32 0.0, %v1035
  %v1037 = vpop.f32.mrf.mxu0
  %v1038 = vpop.f32.mrf.mxu0
  %v1039 = vadd.f32 0.0, %v1038
  %v1040 = vpop.f32.mrf.mxu0
  %1041 = vdwg.mxu0
  %v1042 = vsel %vm445, %v980, 0.0
  %v1043 = vsel %vm446, %v983, 0.0
  %v1044 = vsel %vm447, %v988, 0.0
  %v1045 = vsel %vm448, %v991, 0.0
  %v1046 = vsel %vm449, %v996, 0.0
  %v1047 = vsel %vm450, %v999, 0.0
  %v1048 = vsel %vm451, %v1004, 0.0
  %v1049 = vsel %vm452, %v1007, 0.0
  %v1050 = vsel %vm453, %v1012, 0.0
  %v1051 = vsel %vm454, %v1015, 0.0
  %v1052 = vsel %vm455, %v1020, 0.0
  %v1053 = vsel %vm456, %v1023, 0.0
  %v1054 = vsel %vm457, %v1028, 0.0
  %v1055 = vsel %vm458, %v1031, 0.0
  %v1056 = vsel %vm459, %v1036, 0.0
  %v1057 = vsel %vm460, %v1039, 0.0
  %1058 = vadd.xlane.f32.xlu0 %v1042
  %v1059 = vpop.xlane.xlu0 %1058
  %1060 = vadd.xlane.f32.xlu0 %v1043
  %v1061 = vpop.xlane.xlu0 %1060
  %1062 = vadd.xlane.f32.xlu0 %v1044
  %v1063 = vpop.xlane.xlu0 %1062
  %1064 = vadd.xlane.f32.xlu0 %v1045
  %v1065 = vpop.xlane.xlu0 %1064
  %1066 = vadd.xlane.f32.xlu0 %v1046
  %v1067 = vpop.xlane.xlu0 %1066
  %1068 = vadd.xlane.f32.xlu0 %v1047
  %v1069 = vpop.xlane.xlu0 %1068
  %1070 = vadd.xlane.f32.xlu0 %v1048
  %v1071 = vpop.xlane.xlu0 %1070
  %1072 = vadd.xlane.f32.xlu0 %v1049
  %v1073 = vpop.xlane.xlu0 %1072
  %1074 = vadd.xlane.f32.xlu0 %v1050
  %v1075 = vpop.xlane.xlu0 %1074
  %1076 = vadd.xlane.f32.xlu0 %v1051
  %v1077 = vpop.xlane.xlu0 %1076
  %1078 = vadd.xlane.f32.xlu0 %v1052
  %v1079 = vpop.xlane.xlu0 %1078
  %1080 = vadd.xlane.f32.xlu0 %v1053
  %v1081 = vpop.xlane.xlu0 %1080
  %1082 = vadd.xlane.f32.xlu0 %v1054
  %v1083 = vpop.xlane.xlu0 %1082
  %1084 = vadd.xlane.f32.xlu0 %v1055
  %v1085 = vpop.xlane.xlu0 %1084
  %1086 = vadd.xlane.f32.xlu0 %v1056
  %v1087 = vpop.xlane.xlu0 %1086
  %1088 = vadd.xlane.f32.xlu0 %v1057
  %v1089 = vpop.xlane.xlu0 %1088
  %v1090 = vld [vmem:[%s4] sm:$0xff]
  %v1091 = vld [vmem:[%s4 + $0x8] sm:$0xff]
  %v1092 = vld [vmem:[%s4 + $0x10] sm:$0xff]
  %v1093 = vld [vmem:[%s4 + $0x18] sm:$0xff]
  %v1094 = vld [vmem:[%s4 + $0x20] sm:$0xff]
  %v1095 = vld [vmem:[%s4 + $0x28] sm:$0xff]
  %v1096 = vld [vmem:[%s4 + $0x30] sm:$0xff]
  %v1097 = vld [vmem:[%s4 + $0x38] sm:$0xff]
  %v1098 = vld [vmem:[%s4 + $0x40] sm:$0xff]
  %v1099 = vld [vmem:[%s4 + $0x48] sm:$0xff]
  %v1100 = vld [vmem:[%s4 + $0x50] sm:$0xff]
  %v1101 = vld [vmem:[%s4 + $0x58] sm:$0xff]
  %v1102 = vld [vmem:[%s4 + $0x60] sm:$0xff]
  %v1103 = vld [vmem:[%s4 + $0x68] sm:$0xff]
  %v1104 = vld [vmem:[%s4 + $0x70] sm:$0xff]
  %v1105 = vld [vmem:[%s4 + $0x78] sm:$0xff]
  %v1106 = vcvt.s32.f32 %v261
  %v1107 = vcvt.s32.f32 %v262
  %v1108 = vcvt.s32.f32 %v263
  %v1109 = vcvt.s32.f32 %v264
  %v1110 = vcvt.s32.f32 %v265
  %v1111 = vcvt.s32.f32 %v266
  %v1112 = vcvt.s32.f32 %v267
  %v1113 = vcvt.s32.f32 %v268
  %v1114 = vcvt.s32.f32 %v269
  %v1115 = vcvt.s32.f32 %v270
  %v1116 = vcvt.s32.f32 %v271
  %v1117 = vcvt.s32.f32 %v272
  %v1118 = vcvt.s32.f32 %v273
  %v1119 = vcvt.s32.f32 %v274
  %v1120 = vcvt.s32.f32 %v275
  %v1121 = vcvt.s32.f32 %v276
  %v1122 = vsub.f32 %v606, %v1090
  %v1123 = vsub.f32 %v608, %v1091
  %v1124 = vsub.f32 %v610, %v1092
  %v1125 = vsub.f32 %v612, %v1093
  %v1126 = vsub.f32 %v614, %v1094
  %v1127 = vsub.f32 %v616, %v1095
  %v1128 = vsub.f32 %v618, %v1096
  %v1129 = vsub.f32 %v620, %v1097
  %v1130 = vsub.f32 %v622, %v1098
  %v1131 = vsub.f32 %v624, %v1099
  %v1132 = vsub.f32 %v626, %v1100
  %v1133 = vsub.f32 %v628, %v1101
  %v1134 = vsub.f32 %v630, %v1102
  %v1135 = vsub.f32 %v632, %v1103
  %v1136 = vsub.f32 %v634, %v1104
  %v1137 = vsub.f32 %v636, %v1105
  %v1138 = vand.u32 2147483647, %v1122
  %v1139 = vand.u32 2147483647, %v1123
  %v1140 = vand.u32 2147483647, %v1124
  %v1141 = vand.u32 2147483647, %v1125
  %v1142 = vand.u32 2147483647, %v1126
  %v1143 = vand.u32 2147483647, %v1127
  %v1144 = vand.u32 2147483647, %v1128
  %v1145 = vand.u32 2147483647, %v1129
  %v1146 = vand.u32 2147483647, %v1130
  %v1147 = vand.u32 2147483647, %v1131
  %v1148 = vand.u32 2147483647, %v1132
  %v1149 = vand.u32 2147483647, %v1133
  %v1150 = vand.u32 2147483647, %v1134
  %v1151 = vand.u32 2147483647, %v1135
  %v1152 = vand.u32 2147483647, %v1136
  %v1153 = vand.u32 2147483647, %v1137
  %v1154 = vsub.f32 %v757, %v1090
  %v1155 = vsub.f32 %v759, %v1091
  %v1156 = vsub.f32 %v761, %v1092
  %v1157 = vsub.f32 %v763, %v1093
  %v1158 = vsub.f32 %v765, %v1094
  %v1159 = vsub.f32 %v767, %v1095
  %v1160 = vsub.f32 %v769, %v1096
  %v1161 = vsub.f32 %v771, %v1097
  %v1162 = vsub.f32 %v773, %v1098
  %v1163 = vsub.f32 %v775, %v1099
  %v1164 = vsub.f32 %v777, %v1100
  %v1165 = vsub.f32 %v779, %v1101
  %v1166 = vsub.f32 %v781, %v1102
  %v1167 = vsub.f32 %v783, %v1103
  %v1168 = vsub.f32 %v785, %v1104
  %v1169 = vsub.f32 %v787, %v1105
  %v1170 = vand.u32 2147483647, %v1154
  %v1171 = vand.u32 2147483647, %v1155
  %v1172 = vand.u32 2147483647, %v1156
  %v1173 = vand.u32 2147483647, %v1157
  %v1174 = vand.u32 2147483647, %v1158
  %v1175 = vand.u32 2147483647, %v1159
  %v1176 = vand.u32 2147483647, %v1160
  %v1177 = vand.u32 2147483647, %v1161
  %v1178 = vand.u32 2147483647, %v1162
  %v1179 = vand.u32 2147483647, %v1163
  %v1180 = vand.u32 2147483647, %v1164
  %v1181 = vand.u32 2147483647, %v1165
  %v1182 = vand.u32 2147483647, %v1166
  %v1183 = vand.u32 2147483647, %v1167
  %v1184 = vand.u32 2147483647, %v1168
  %v1185 = vand.u32 2147483647, %v1169
  %1202 = vrot.lane.b32.xlu0 %v1170, 127
  %v1203 = vpop.permute.xlu0 %1202
  %1204 = vrot.lane.b32.xlu0 %v1171, 127
  %v1205 = vpop.permute.xlu0 %1204
  %1206 = vrot.lane.b32.xlu0 %v1172, 127
  %v1207 = vpop.permute.xlu0 %1206
  %1208 = vrot.lane.b32.xlu0 %v1173, 127
  %v1209 = vpop.permute.xlu0 %1208
  %1210 = vrot.lane.b32.xlu0 %v1174, 127
  %v1211 = vpop.permute.xlu0 %1210
  %1212 = vrot.lane.b32.xlu0 %v1175, 127
  %v1213 = vpop.permute.xlu0 %1212
  %1214 = vrot.lane.b32.xlu0 %v1176, 127
  %v1215 = vpop.permute.xlu0 %1214
  %1216 = vrot.lane.b32.xlu0 %v1177, 127
  %v1217 = vpop.permute.xlu0 %1216
  %1218 = vrot.lane.b32.xlu0 %v1178, 127
  %v1219 = vpop.permute.xlu0 %1218
  %1220 = vrot.lane.b32.xlu0 %v1179, 127
  %v1221 = vpop.permute.xlu0 %1220
  %1222 = vrot.lane.b32.xlu0 %v1180, 127
  %v1223 = vpop.permute.xlu0 %1222
  %1224 = vrot.lane.b32.xlu0 %v1181, 127
  %v1225 = vpop.permute.xlu0 %1224
  %1226 = vrot.lane.b32.xlu0 %v1182, 127
  %v1227 = vpop.permute.xlu0 %1226
  %1228 = vrot.lane.b32.xlu0 %v1183, 127
  %v1229 = vpop.permute.xlu0 %1228
  %1230 = vrot.lane.b32.xlu0 %v1184, 127
  %v1231 = vpop.permute.xlu0 %1230
  %1232 = vrot.lane.b32.xlu0 %v1185, 127
  %v1233 = vpop.permute.xlu0 %1232
  %v1250 = vadd.f32 %v1138, %v1203
  %v1251 = vadd.f32 %v1139, %v1205
  %v1252 = vadd.f32 %v1140, %v1207
  %v1253 = vadd.f32 %v1141, %v1209
  %v1254 = vadd.f32 %v1142, %v1211
  %v1255 = vadd.f32 %v1143, %v1213
  %v1256 = vadd.f32 %v1144, %v1215
  %v1257 = vadd.f32 %v1145, %v1217
  %v1258 = vadd.f32 %v1146, %v1219
  %v1259 = vadd.f32 %v1147, %v1221
  %v1260 = vadd.f32 %v1148, %v1223
  %v1261 = vadd.f32 %v1149, %v1225
  %v1262 = vadd.f32 %v1150, %v1227
  %v1263 = vadd.f32 %v1151, %v1229
  %v1264 = vadd.f32 %v1152, %v1231
  %v1265 = vadd.f32 %v1153, %v1233
  %v1266 = vsub.f32 %v908, %v1090
  %v1267 = vsub.f32 %v910, %v1091
  %v1268 = vsub.f32 %v912, %v1092
  %v1269 = vsub.f32 %v914, %v1093
  %v1270 = vsub.f32 %v916, %v1094
  %v1271 = vsub.f32 %v918, %v1095
  %v1272 = vsub.f32 %v920, %v1096
  %v1273 = vsub.f32 %v922, %v1097
  %v1274 = vsub.f32 %v924, %v1098
  %v1275 = vsub.f32 %v926, %v1099
  %v1276 = vsub.f32 %v928, %v1100
  %v1277 = vsub.f32 %v930, %v1101
  %v1278 = vsub.f32 %v932, %v1102
  %v1279 = vsub.f32 %v934, %v1103
  %v1280 = vsub.f32 %v936, %v1104
  %v1281 = vsub.f32 %v938, %v1105
  %v1282 = vand.u32 2147483647, %v1266
  %v1283 = vand.u32 2147483647, %v1267
  %v1284 = vand.u32 2147483647, %v1268
  %v1285 = vand.u32 2147483647, %v1269
  %v1286 = vand.u32 2147483647, %v1270
  %v1287 = vand.u32 2147483647, %v1271
  %v1288 = vand.u32 2147483647, %v1272
  %v1289 = vand.u32 2147483647, %v1273
  %v1290 = vand.u32 2147483647, %v1274
  %v1291 = vand.u32 2147483647, %v1275
  %v1292 = vand.u32 2147483647, %v1276
  %v1293 = vand.u32 2147483647, %v1277
  %v1294 = vand.u32 2147483647, %v1278
  %v1295 = vand.u32 2147483647, %v1279
  %v1296 = vand.u32 2147483647, %v1280
  %v1297 = vand.u32 2147483647, %v1281
  %1314 = vrot.lane.b32.xlu0 %v1282, 126
  %v1315 = vpop.permute.xlu0 %1314
  %1316 = vrot.lane.b32.xlu0 %v1283, 126
  %v1317 = vpop.permute.xlu0 %1316
  %1318 = vrot.lane.b32.xlu0 %v1284, 126
  %v1319 = vpop.permute.xlu0 %1318
  %1320 = vrot.lane.b32.xlu0 %v1285, 126
  %v1321 = vpop.permute.xlu0 %1320
  %1322 = vrot.lane.b32.xlu0 %v1286, 126
  %v1323 = vpop.permute.xlu0 %1322
  %1324 = vrot.lane.b32.xlu0 %v1287, 126
  %v1325 = vpop.permute.xlu0 %1324
  %1326 = vrot.lane.b32.xlu0 %v1288, 126
  %v1327 = vpop.permute.xlu0 %1326
  %1328 = vrot.lane.b32.xlu0 %v1289, 126
  %v1329 = vpop.permute.xlu0 %1328
  %1330 = vrot.lane.b32.xlu0 %v1290, 126
  %v1331 = vpop.permute.xlu0 %1330
  %1332 = vrot.lane.b32.xlu0 %v1291, 126
  %v1333 = vpop.permute.xlu0 %1332
  %1334 = vrot.lane.b32.xlu0 %v1292, 126
  %v1335 = vpop.permute.xlu0 %1334
  %1336 = vrot.lane.b32.xlu0 %v1293, 126
  %v1337 = vpop.permute.xlu0 %1336
  %1338 = vrot.lane.b32.xlu0 %v1294, 126
  %v1339 = vpop.permute.xlu0 %1338
  %1340 = vrot.lane.b32.xlu0 %v1295, 126
  %v1341 = vpop.permute.xlu0 %1340
  %1342 = vrot.lane.b32.xlu0 %v1296, 126
  %v1343 = vpop.permute.xlu0 %1342
  %1344 = vrot.lane.b32.xlu0 %v1297, 126
  %v1345 = vpop.permute.xlu0 %1344
  %v1362 = vadd.f32 %v1250, %v1315
  %v1363 = vadd.f32 %v1251, %v1317
  %v1364 = vadd.f32 %v1252, %v1319
  %v1365 = vadd.f32 %v1253, %v1321
  %v1366 = vadd.f32 %v1254, %v1323
  %v1367 = vadd.f32 %v1255, %v1325
  %v1368 = vadd.f32 %v1256, %v1327
  %v1369 = vadd.f32 %v1257, %v1329
  %v1370 = vadd.f32 %v1258, %v1331
  %v1371 = vadd.f32 %v1259, %v1333
  %v1372 = vadd.f32 %v1260, %v1335
  %v1373 = vadd.f32 %v1261, %v1337
  %v1374 = vadd.f32 %v1262, %v1339
  %v1375 = vadd.f32 %v1263, %v1341
  %v1376 = vadd.f32 %v1264, %v1343
  %v1377 = vadd.f32 %v1265, %v1345
  %v1378 = vsub.f32 %v1059, %v1090
  %v1379 = vsub.f32 %v1061, %v1091
  %v1380 = vsub.f32 %v1063, %v1092
  %v1381 = vsub.f32 %v1065, %v1093
  %v1382 = vsub.f32 %v1067, %v1094
  %v1383 = vsub.f32 %v1069, %v1095
  %v1384 = vsub.f32 %v1071, %v1096
  %v1385 = vsub.f32 %v1073, %v1097
  %v1386 = vsub.f32 %v1075, %v1098
  %v1387 = vsub.f32 %v1077, %v1099
  %v1388 = vsub.f32 %v1079, %v1100
  %v1389 = vsub.f32 %v1081, %v1101
  %v1390 = vsub.f32 %v1083, %v1102
  %v1391 = vsub.f32 %v1085, %v1103
  %v1392 = vsub.f32 %v1087, %v1104
  %v1393 = vsub.f32 %v1089, %v1105
  %v1394 = vand.u32 2147483647, %v1378
  %v1395 = vand.u32 2147483647, %v1379
  %v1396 = vand.u32 2147483647, %v1380
  %v1397 = vand.u32 2147483647, %v1381
  %v1398 = vand.u32 2147483647, %v1382
  %v1399 = vand.u32 2147483647, %v1383
  %v1400 = vand.u32 2147483647, %v1384
  %v1401 = vand.u32 2147483647, %v1385
  %v1402 = vand.u32 2147483647, %v1386
  %v1403 = vand.u32 2147483647, %v1387
  %v1404 = vand.u32 2147483647, %v1388
  %v1405 = vand.u32 2147483647, %v1389
  %v1406 = vand.u32 2147483647, %v1390
  %v1407 = vand.u32 2147483647, %v1391
  %v1408 = vand.u32 2147483647, %v1392
  %v1409 = vand.u32 2147483647, %v1393
  %1426 = vrot.lane.b32.xlu0 %v1394, 125
  %v1427 = vpop.permute.xlu0 %1426
  %1428 = vrot.lane.b32.xlu0 %v1395, 125
  %v1429 = vpop.permute.xlu0 %1428
  %1430 = vrot.lane.b32.xlu0 %v1396, 125
  %v1431 = vpop.permute.xlu0 %1430
  %1432 = vrot.lane.b32.xlu0 %v1397, 125
  %v1433 = vpop.permute.xlu0 %1432
  %1434 = vrot.lane.b32.xlu0 %v1398, 125
  %v1435 = vpop.permute.xlu0 %1434
  %1436 = vrot.lane.b32.xlu0 %v1399, 125
  %v1437 = vpop.permute.xlu0 %1436
  %1438 = vrot.lane.b32.xlu0 %v1400, 125
  %v1439 = vpop.permute.xlu0 %1438
  %1440 = vrot.lane.b32.xlu0 %v1401, 125
  %v1441 = vpop.permute.xlu0 %1440
  %1442 = vrot.lane.b32.xlu0 %v1402, 125
  %v1443 = vpop.permute.xlu0 %1442
  %1444 = vrot.lane.b32.xlu0 %v1403, 125
  %v1445 = vpop.permute.xlu0 %1444
  %1446 = vrot.lane.b32.xlu0 %v1404, 125
  %v1447 = vpop.permute.xlu0 %1446
  %1448 = vrot.lane.b32.xlu0 %v1405, 125
  %v1449 = vpop.permute.xlu0 %1448
  %1450 = vrot.lane.b32.xlu0 %v1406, 125
  %v1451 = vpop.permute.xlu0 %1450
  %1452 = vrot.lane.b32.xlu0 %v1407, 125
  %v1453 = vpop.permute.xlu0 %1452
  %1454 = vrot.lane.b32.xlu0 %v1408, 125
  %v1455 = vpop.permute.xlu0 %1454
  %1456 = vrot.lane.b32.xlu0 %v1409, 125
  %v1457 = vpop.permute.xlu0 %1456
  %v1474 = vadd.f32 %v1362, %v1427
  %v1475 = vadd.f32 %v1363, %v1429
  %v1476 = vadd.f32 %v1364, %v1431
  %v1477 = vadd.f32 %v1365, %v1433
  %v1478 = vadd.f32 %v1366, %v1435
  %v1479 = vadd.f32 %v1367, %v1437
  %v1480 = vadd.f32 %v1368, %v1439
  %v1481 = vadd.f32 %v1369, %v1441
  %v1482 = vadd.f32 %v1370, %v1443
  %v1483 = vadd.f32 %v1371, %v1445
  %v1484 = vadd.f32 %v1372, %v1447
  %v1485 = vadd.f32 %v1373, %v1449
  %v1486 = vadd.f32 %v1374, %v1451
  %v1487 = vadd.f32 %v1375, %v1453
  %v1488 = vadd.f32 %v1376, %v1455
  %v1489 = vadd.f32 %v1377, %v1457
  %v1490 = vmul.f32 %v1474, %v1106
  %v1491 = vmul.f32 %v1475, %v1107
  %v1492 = vmul.f32 %v1476, %v1108
  %v1493 = vmul.f32 %v1477, %v1109
  %v1494 = vmul.f32 %v1478, %v1110
  %v1495 = vmul.f32 %v1479, %v1111
  %v1496 = vmul.f32 %v1480, %v1112
  %v1497 = vmul.f32 %v1481, %v1113
  %v1498 = vmul.f32 %v1482, %v1114
  %v1499 = vmul.f32 %v1483, %v1115
  %v1500 = vmul.f32 %v1484, %v1116
  %v1501 = vmul.f32 %v1485, %v1117
  %v1502 = vmul.f32 %v1486, %v1118
  %v1503 = vmul.f32 %v1487, %v1119
  %v1504 = vmul.f32 %v1488, %v1120
  %v1505 = vmul.f32 %v1489, %v1121
  %vm1506 = vcmask 7168
  %v1507 = vsel %vm1506, %v1490, 0.0
  %v1508 = vsel %vm1506, %v1491, 0.0
  %v1509 = vadd.f32 %v1507, %v1508
  %v1510 = vsel %vm1506, %v1492, 0.0
  %v1511 = vadd.f32 %v1509, %v1510
  %v1512 = vsel %vm1506, %v1493, 0.0
  %v1513 = vadd.f32 %v1511, %v1512
  %v1514 = vsel %vm1506, %v1494, 0.0
  %v1515 = vadd.f32 %v1513, %v1514
  %v1516 = vsel %vm1506, %v1495, 0.0
  %v1517 = vadd.f32 %v1515, %v1516
  %v1518 = vsel %vm1506, %v1496, 0.0
  %v1519 = vadd.f32 %v1517, %v1518
  %v1520 = vsel %vm1506, %v1497, 0.0
  %v1521 = vadd.f32 %v1519, %v1520
  %v1522 = vsel %vm1506, %v1498, 0.0
  %v1523 = vadd.f32 %v1521, %v1522
  %v1524 = vsel %vm1506, %v1499, 0.0
  %v1525 = vadd.f32 %v1523, %v1524
  %v1526 = vsel %vm1506, %v1500, 0.0
  %v1527 = vadd.f32 %v1525, %v1526
  %v1528 = vsel %vm1506, %v1501, 0.0
  %v1529 = vadd.f32 %v1527, %v1528
  %v1530 = vsel %vm1506, %v1502, 0.0
  %v1531 = vadd.f32 %v1529, %v1530
  %v1532 = vsel %vm1506, %v1503, 0.0
  %v1533 = vadd.f32 %v1531, %v1532
  %v1534 = vsel %vm1506, %v1504, 0.0
  %v1535 = vadd.f32 %v1533, %v1534
  %v1536 = vsel %vm1506, %v1505, 0.0
  %v1537 = vadd.f32 %v1535, %v1536
  %1538 = vadd.xlane.f32.xlu0 %v1537
  %v1539 = vpop.xlane.xlu0 %1538
  %v1540 = vrot.slane %v1539, 4
  %v1541 = vadd.f32 %v1539, %v1540
  %v1542 = vrot.slane %v1541, 2
  %v1543 = vadd.f32 %v1541, %v1542
  %v1544 = vrot.slane %v1543, 1
  %v1545 = vadd.f32 %v1543, %v1544
  %s1546 = vtos %v1545
  %v1547 = vmul.f32 %v908, 0.5
  %v1548 = vmul.f32 %v910, 0.5
  %v1549 = vmul.f32 %v912, 0.5
  %v1550 = vmul.f32 %v914, 0.5
  %v1551 = vmul.f32 %v916, 0.5
  %v1552 = vmul.f32 %v918, 0.5
  %v1553 = vmul.f32 %v920, 0.5
  %v1554 = vmul.f32 %v922, 0.5
  %v1555 = vmul.f32 %v924, 0.5
  %v1556 = vmul.f32 %v926, 0.5
  %v1557 = vmul.f32 %v928, 0.5
  %v1558 = vmul.f32 %v930, 0.5
  %v1559 = vmul.f32 %v932, 0.5
  %v1560 = vmul.f32 %v934, 0.5
  %v1561 = vmul.f32 %v936, 0.5
  %v1562 = vmul.f32 %v938, 0.5
  %v1563 = vsub.f32 %v606, %v1547
  %v1564 = vsub.f32 %v608, %v1548
  %v1565 = vsub.f32 %v610, %v1549
  %v1566 = vsub.f32 %v612, %v1550
  %v1567 = vsub.f32 %v614, %v1551
  %v1568 = vsub.f32 %v616, %v1552
  %v1569 = vsub.f32 %v618, %v1553
  %v1570 = vsub.f32 %v620, %v1554
  %v1571 = vsub.f32 %v622, %v1555
  %v1572 = vsub.f32 %v624, %v1556
  %v1573 = vsub.f32 %v626, %v1557
  %v1574 = vsub.f32 %v628, %v1558
  %v1575 = vsub.f32 %v630, %v1559
  %v1576 = vsub.f32 %v632, %v1560
  %v1577 = vsub.f32 %v634, %v1561
  %v1578 = vsub.f32 %v636, %v1562
  %v1579 = vmul.f32 %v1059, 0.5
  %v1580 = vmul.f32 %v1061, 0.5
  %v1581 = vmul.f32 %v1063, 0.5
  %v1582 = vmul.f32 %v1065, 0.5
  %v1583 = vmul.f32 %v1067, 0.5
  %v1584 = vmul.f32 %v1069, 0.5
  %v1585 = vmul.f32 %v1071, 0.5
  %v1586 = vmul.f32 %v1073, 0.5
  %v1587 = vmul.f32 %v1075, 0.5
  %v1588 = vmul.f32 %v1077, 0.5
  %v1589 = vmul.f32 %v1079, 0.5
  %v1590 = vmul.f32 %v1081, 0.5
  %v1591 = vmul.f32 %v1083, 0.5
  %v1592 = vmul.f32 %v1085, 0.5
  %v1593 = vmul.f32 %v1087, 0.5
  %v1594 = vmul.f32 %v1089, 0.5
  %v1595 = vsub.f32 %v757, %v1579
  %v1596 = vsub.f32 %v759, %v1580
  %v1597 = vsub.f32 %v761, %v1581
  %v1598 = vsub.f32 %v763, %v1582
  %v1599 = vsub.f32 %v765, %v1583
  %v1600 = vsub.f32 %v767, %v1584
  %v1601 = vsub.f32 %v769, %v1585
  %v1602 = vsub.f32 %v771, %v1586
  %v1603 = vsub.f32 %v773, %v1587
  %v1604 = vsub.f32 %v775, %v1588
  %v1605 = vsub.f32 %v777, %v1589
  %v1606 = vsub.f32 %v779, %v1590
  %v1607 = vsub.f32 %v781, %v1591
  %v1608 = vsub.f32 %v783, %v1592
  %v1609 = vsub.f32 %v785, %v1593
  %v1610 = vsub.f32 %v787, %v1594
  %v1611 = vadd.f32 %v606, %v1547
  %v1612 = vadd.f32 %v608, %v1548
  %v1613 = vadd.f32 %v610, %v1549
  %v1614 = vadd.f32 %v612, %v1550
  %v1615 = vadd.f32 %v614, %v1551
  %v1616 = vadd.f32 %v616, %v1552
  %v1617 = vadd.f32 %v618, %v1553
  %v1618 = vadd.f32 %v620, %v1554
  %v1619 = vadd.f32 %v622, %v1555
  %v1620 = vadd.f32 %v624, %v1556
  %v1621 = vadd.f32 %v626, %v1557
  %v1622 = vadd.f32 %v628, %v1558
  %v1623 = vadd.f32 %v630, %v1559
  %v1624 = vadd.f32 %v632, %v1560
  %v1625 = vadd.f32 %v634, %v1561
  %v1626 = vadd.f32 %v636, %v1562
  %v1627 = vadd.f32 %v757, %v1579
  %v1628 = vadd.f32 %v759, %v1580
  %v1629 = vadd.f32 %v761, %v1581
  %v1630 = vadd.f32 %v763, %v1582
  %v1631 = vadd.f32 %v765, %v1583
  %v1632 = vadd.f32 %v767, %v1584
  %v1633 = vadd.f32 %v769, %v1585
  %v1634 = vadd.f32 %v771, %v1586
  %v1635 = vadd.f32 %v773, %v1587
  %v1636 = vadd.f32 %v775, %v1588
  %v1637 = vadd.f32 %v777, %v1589
  %v1638 = vadd.f32 %v779, %v1590
  %v1639 = vadd.f32 %v781, %v1591
  %v1640 = vadd.f32 %v783, %v1592
  %v1641 = vadd.f32 %v785, %v1593
  %v1642 = vadd.f32 %v787, %v1594
  %v1643 = vmul.f32 %v1090, 0.5
  %v1644 = vmul.f32 %v1091, 0.5
  %v1645 = vmul.f32 %v1092, 0.5
  %v1646 = vmul.f32 %v1093, 0.5
  %v1647 = vmul.f32 %v1094, 0.5
  %v1648 = vmul.f32 %v1095, 0.5
  %v1649 = vmul.f32 %v1096, 0.5
  %v1650 = vmul.f32 %v1097, 0.5
  %v1651 = vmul.f32 %v1098, 0.5
  %v1652 = vmul.f32 %v1099, 0.5
  %v1653 = vmul.f32 %v1100, 0.5
  %v1654 = vmul.f32 %v1101, 0.5
  %v1655 = vmul.f32 %v1102, 0.5
  %v1656 = vmul.f32 %v1103, 0.5
  %v1657 = vmul.f32 %v1104, 0.5
  %v1658 = vmul.f32 %v1105, 0.5
  %1675 = vrot.lane.b32.xlu0 %v1643, 126
  %v1676 = vpop.permute.xlu0 %1675
  %1677 = vrot.lane.b32.xlu0 %v1644, 126
  %v1678 = vpop.permute.xlu0 %1677
  %1679 = vrot.lane.b32.xlu0 %v1645, 126
  %v1680 = vpop.permute.xlu0 %1679
  %1681 = vrot.lane.b32.xlu0 %v1646, 126
  %v1682 = vpop.permute.xlu0 %1681
  %1683 = vrot.lane.b32.xlu0 %v1647, 126
  %v1684 = vpop.permute.xlu0 %1683
  %1685 = vrot.lane.b32.xlu0 %v1648, 126
  %v1686 = vpop.permute.xlu0 %1685
  %1687 = vrot.lane.b32.xlu0 %v1649, 126
  %v1688 = vpop.permute.xlu0 %1687
  %1689 = vrot.lane.b32.xlu0 %v1650, 126
  %v1690 = vpop.permute.xlu0 %1689
  %1691 = vrot.lane.b32.xlu0 %v1651, 126
  %v1692 = vpop.permute.xlu0 %1691
  %1693 = vrot.lane.b32.xlu0 %v1652, 126
  %v1694 = vpop.permute.xlu0 %1693
  %1695 = vrot.lane.b32.xlu0 %v1653, 126
  %v1696 = vpop.permute.xlu0 %1695
  %1697 = vrot.lane.b32.xlu0 %v1654, 126
  %v1698 = vpop.permute.xlu0 %1697
  %1699 = vrot.lane.b32.xlu0 %v1655, 126
  %v1700 = vpop.permute.xlu0 %1699
  %1701 = vrot.lane.b32.xlu0 %v1656, 126
  %v1702 = vpop.permute.xlu0 %1701
  %1703 = vrot.lane.b32.xlu0 %v1657, 126
  %v1704 = vpop.permute.xlu0 %1703
  %1705 = vrot.lane.b32.xlu0 %v1658, 126
  %v1706 = vpop.permute.xlu0 %1705
  %v1723 = vsub.f32 %v1090, %v1676
  %v1724 = vsub.f32 %v1091, %v1678
  %v1725 = vsub.f32 %v1092, %v1680
  %v1726 = vsub.f32 %v1093, %v1682
  %v1727 = vsub.f32 %v1094, %v1684
  %v1728 = vsub.f32 %v1095, %v1686
  %v1729 = vsub.f32 %v1096, %v1688
  %v1730 = vsub.f32 %v1097, %v1690
  %v1731 = vsub.f32 %v1098, %v1692
  %v1732 = vsub.f32 %v1099, %v1694
  %v1733 = vsub.f32 %v1100, %v1696
  %v1734 = vsub.f32 %v1101, %v1698
  %v1735 = vsub.f32 %v1102, %v1700
  %v1736 = vsub.f32 %v1103, %v1702
  %v1737 = vsub.f32 %v1104, %v1704
  %v1738 = vsub.f32 %v1105, %v1706
  %v1739 = vadd.f32 %v1090, %v1676
  %v1740 = vadd.f32 %v1091, %v1678
  %v1741 = vadd.f32 %v1092, %v1680
  %v1742 = vadd.f32 %v1093, %v1682
  %v1743 = vadd.f32 %v1094, %v1684
  %v1744 = vadd.f32 %v1095, %v1686
  %v1745 = vadd.f32 %v1096, %v1688
  %v1746 = vadd.f32 %v1097, %v1690
  %v1747 = vadd.f32 %v1098, %v1692
  %v1748 = vadd.f32 %v1099, %v1694
  %v1749 = vadd.f32 %v1100, %v1696
  %v1750 = vadd.f32 %v1101, %v1698
  %v1751 = vadd.f32 %v1102, %v1700
  %v1752 = vadd.f32 %v1103, %v1702
  %v1753 = vadd.f32 %v1104, %v1704
  %v1754 = vadd.f32 %v1105, %v1706
  %v1755 = vsub.f32 %v1611, %v1563
  %v1756 = vsub.f32 %v1612, %v1564
  %v1757 = vsub.f32 %v1613, %v1565
  %v1758 = vsub.f32 %v1614, %v1566
  %v1759 = vsub.f32 %v1615, %v1567
  %v1760 = vsub.f32 %v1616, %v1568
  %v1761 = vsub.f32 %v1617, %v1569
  %v1762 = vsub.f32 %v1618, %v1570
  %v1763 = vsub.f32 %v1619, %v1571
  %v1764 = vsub.f32 %v1620, %v1572
  %v1765 = vsub.f32 %v1621, %v1573
  %v1766 = vsub.f32 %v1622, %v1574
  %v1767 = vsub.f32 %v1623, %v1575
  %v1768 = vsub.f32 %v1624, %v1576
  %v1769 = vsub.f32 %v1625, %v1577
  %v1770 = vsub.f32 %v1626, %v1578
  %v1771 = vsub.f32 %v1627, %v1595
  %v1772 = vsub.f32 %v1628, %v1596
  %v1773 = vsub.f32 %v1629, %v1597
  %v1774 = vsub.f32 %v1630, %v1598
  %v1775 = vsub.f32 %v1631, %v1599
  %v1776 = vsub.f32 %v1632, %v1600
  %v1777 = vsub.f32 %v1633, %v1601
  %v1778 = vsub.f32 %v1634, %v1602
  %v1779 = vsub.f32 %v1635, %v1603
  %v1780 = vsub.f32 %v1636, %v1604
  %v1781 = vsub.f32 %v1637, %v1605
  %v1782 = vsub.f32 %v1638, %v1606
  %v1783 = vsub.f32 %v1639, %v1607
  %v1784 = vsub.f32 %v1640, %v1608
  %v1785 = vsub.f32 %v1641, %v1609
  %v1786 = vsub.f32 %v1642, %v1610
  %v1787 = vmul.f32 %v1755, %v1771
  %v1788 = vmul.f32 %v1756, %v1772
  %v1789 = vmul.f32 %v1757, %v1773
  %v1790 = vmul.f32 %v1758, %v1774
  %v1791 = vmul.f32 %v1759, %v1775
  %v1792 = vmul.f32 %v1760, %v1776
  %v1793 = vmul.f32 %v1761, %v1777
  %v1794 = vmul.f32 %v1762, %v1778
  %v1795 = vmul.f32 %v1763, %v1779
  %v1796 = vmul.f32 %v1764, %v1780
  %v1797 = vmul.f32 %v1765, %v1781
  %v1798 = vmul.f32 %v1766, %v1782
  %v1799 = vmul.f32 %v1767, %v1783
  %v1800 = vmul.f32 %v1768, %v1784
  %v1801 = vmul.f32 %v1769, %v1785
  %v1802 = vmul.f32 %v1770, %v1786
  %v1803 = vsub.f32 %v1739, %v1723
  %v1804 = vsub.f32 %v1740, %v1724
  %v1805 = vsub.f32 %v1741, %v1725
  %v1806 = vsub.f32 %v1742, %v1726
  %v1807 = vsub.f32 %v1743, %v1727
  %v1808 = vsub.f32 %v1744, %v1728
  %v1809 = vsub.f32 %v1745, %v1729
  %v1810 = vsub.f32 %v1746, %v1730
  %v1811 = vsub.f32 %v1747, %v1731
  %v1812 = vsub.f32 %v1748, %v1732
  %v1813 = vsub.f32 %v1749, %v1733
  %v1814 = vsub.f32 %v1750, %v1734
  %v1815 = vsub.f32 %v1751, %v1735
  %v1816 = vsub.f32 %v1752, %v1736
  %v1817 = vsub.f32 %v1753, %v1737
  %v1818 = vsub.f32 %v1754, %v1738
  %1835 = vrot.lane.b32.xlu0 %v1803, 127
  %v1836 = vpop.permute.xlu0 %1835
  %1837 = vrot.lane.b32.xlu0 %v1804, 127
  %v1838 = vpop.permute.xlu0 %1837
  %1839 = vrot.lane.b32.xlu0 %v1805, 127
  %v1840 = vpop.permute.xlu0 %1839
  %1841 = vrot.lane.b32.xlu0 %v1806, 127
  %v1842 = vpop.permute.xlu0 %1841
  %1843 = vrot.lane.b32.xlu0 %v1807, 127
  %v1844 = vpop.permute.xlu0 %1843
  %1845 = vrot.lane.b32.xlu0 %v1808, 127
  %v1846 = vpop.permute.xlu0 %1845
  %1847 = vrot.lane.b32.xlu0 %v1809, 127
  %v1848 = vpop.permute.xlu0 %1847
  %1849 = vrot.lane.b32.xlu0 %v1810, 127
  %v1850 = vpop.permute.xlu0 %1849
  %1851 = vrot.lane.b32.xlu0 %v1811, 127
  %v1852 = vpop.permute.xlu0 %1851
  %1853 = vrot.lane.b32.xlu0 %v1812, 127
  %v1854 = vpop.permute.xlu0 %1853
  %1855 = vrot.lane.b32.xlu0 %v1813, 127
  %v1856 = vpop.permute.xlu0 %1855
  %1857 = vrot.lane.b32.xlu0 %v1814, 127
  %v1858 = vpop.permute.xlu0 %1857
  %1859 = vrot.lane.b32.xlu0 %v1815, 127
  %v1860 = vpop.permute.xlu0 %1859
  %1861 = vrot.lane.b32.xlu0 %v1816, 127
  %v1862 = vpop.permute.xlu0 %1861
  %1863 = vrot.lane.b32.xlu0 %v1817, 127
  %v1864 = vpop.permute.xlu0 %1863
  %1865 = vrot.lane.b32.xlu0 %v1818, 127
  %v1866 = vpop.permute.xlu0 %1865
  %v1883 = vmul.f32 %v1803, %v1836
  %v1884 = vmul.f32 %v1804, %v1838
  %v1885 = vmul.f32 %v1805, %v1840
  %v1886 = vmul.f32 %v1806, %v1842
  %v1887 = vmul.f32 %v1807, %v1844
  %v1888 = vmul.f32 %v1808, %v1846
  %v1889 = vmul.f32 %v1809, %v1848
  %v1890 = vmul.f32 %v1810, %v1850
  %v1891 = vmul.f32 %v1811, %v1852
  %v1892 = vmul.f32 %v1812, %v1854
  %v1893 = vmul.f32 %v1813, %v1856
  %v1894 = vmul.f32 %v1814, %v1858
  %v1895 = vmul.f32 %v1815, %v1860
  %v1896 = vmul.f32 %v1816, %v1862
  %v1897 = vmul.f32 %v1817, %v1864
  %v1898 = vmul.f32 %v1818, %v1866
  %v1899 = vmin.f32 %v1611, %v1739
  %v1900 = vmin.f32 %v1612, %v1740
  %v1901 = vmin.f32 %v1613, %v1741
  %v1902 = vmin.f32 %v1614, %v1742
  %v1903 = vmin.f32 %v1615, %v1743
  %v1904 = vmin.f32 %v1616, %v1744
  %v1905 = vmin.f32 %v1617, %v1745
  %v1906 = vmin.f32 %v1618, %v1746
  %v1907 = vmin.f32 %v1619, %v1747
  %v1908 = vmin.f32 %v1620, %v1748
  %v1909 = vmin.f32 %v1621, %v1749
  %v1910 = vmin.f32 %v1622, %v1750
  %v1911 = vmin.f32 %v1623, %v1751
  %v1912 = vmin.f32 %v1624, %v1752
  %v1913 = vmin.f32 %v1625, %v1753
  %v1914 = vmin.f32 %v1626, %v1754
  %v1915 = vmax.f32 %v1563, %v1723
  %v1916 = vmax.f32 %v1564, %v1724
  %v1917 = vmax.f32 %v1565, %v1725
  %v1918 = vmax.f32 %v1566, %v1726
  %v1919 = vmax.f32 %v1567, %v1727
  %v1920 = vmax.f32 %v1568, %v1728
  %v1921 = vmax.f32 %v1569, %v1729
  %v1922 = vmax.f32 %v1570, %v1730
  %v1923 = vmax.f32 %v1571, %v1731
  %v1924 = vmax.f32 %v1572, %v1732
  %v1925 = vmax.f32 %v1573, %v1733
  %v1926 = vmax.f32 %v1574, %v1734
  %v1927 = vmax.f32 %v1575, %v1735
  %v1928 = vmax.f32 %v1576, %v1736
  %v1929 = vmax.f32 %v1577, %v1737
  %v1930 = vmax.f32 %v1578, %v1738
  %v1931 = vsub.f32 %v1899, %v1915
  %v1932 = vsub.f32 %v1900, %v1916
  %v1933 = vsub.f32 %v1901, %v1917
  %v1934 = vsub.f32 %v1902, %v1918
  %v1935 = vsub.f32 %v1903, %v1919
  %v1936 = vsub.f32 %v1904, %v1920
  %v1937 = vsub.f32 %v1905, %v1921
  %v1938 = vsub.f32 %v1906, %v1922
  %v1939 = vsub.f32 %v1907, %v1923
  %v1940 = vsub.f32 %v1908, %v1924
  %v1941 = vsub.f32 %v1909, %v1925
  %v1942 = vsub.f32 %v1910, %v1926
  %v1943 = vsub.f32 %v1911, %v1927
  %v1944 = vsub.f32 %v1912, %v1928
  %v1945 = vsub.f32 %v1913, %v1929
  %v1946 = vsub.f32 %v1914, %v1930
  %v1947 = vmax.f32 %v1931, 0.0
  %v1948 = vmax.f32 %v1932, 0.0
  %v1949 = vmax.f32 %v1933, 0.0
  %v1950 = vmax.f32 %v1934, 0.0
  %v1951 = vmax.f32 %v1935, 0.0
  %v1952 = vmax.f32 %v1936, 0.0
  %v1953 = vmax.f32 %v1937, 0.0
  %v1954 = vmax.f32 %v1938, 0.0
  %v1955 = vmax.f32 %v1939, 0.0
  %v1956 = vmax.f32 %v1940, 0.0
  %v1957 = vmax.f32 %v1941, 0.0
  %v1958 = vmax.f32 %v1942, 0.0
  %v1959 = vmax.f32 %v1943, 0.0
  %v1960 = vmax.f32 %v1944, 0.0
  %v1961 = vmax.f32 %v1945, 0.0
  %v1962 = vmax.f32 %v1946, 0.0
  %v1963 = vmin.f32 %v1627, %v1739
  %v1964 = vmin.f32 %v1628, %v1740
  %v1965 = vmin.f32 %v1629, %v1741
  %v1966 = vmin.f32 %v1630, %v1742
  %v1967 = vmin.f32 %v1631, %v1743
  %v1968 = vmin.f32 %v1632, %v1744
  %v1969 = vmin.f32 %v1633, %v1745
  %v1970 = vmin.f32 %v1634, %v1746
  %v1971 = vmin.f32 %v1635, %v1747
  %v1972 = vmin.f32 %v1636, %v1748
  %v1973 = vmin.f32 %v1637, %v1749
  %v1974 = vmin.f32 %v1638, %v1750
  %v1975 = vmin.f32 %v1639, %v1751
  %v1976 = vmin.f32 %v1640, %v1752
  %v1977 = vmin.f32 %v1641, %v1753
  %v1978 = vmin.f32 %v1642, %v1754
  %v1979 = vmax.f32 %v1595, %v1723
  %v1980 = vmax.f32 %v1596, %v1724
  %v1981 = vmax.f32 %v1597, %v1725
  %v1982 = vmax.f32 %v1598, %v1726
  %v1983 = vmax.f32 %v1599, %v1727
  %v1984 = vmax.f32 %v1600, %v1728
  %v1985 = vmax.f32 %v1601, %v1729
  %v1986 = vmax.f32 %v1602, %v1730
  %v1987 = vmax.f32 %v1603, %v1731
  %v1988 = vmax.f32 %v1604, %v1732
  %v1989 = vmax.f32 %v1605, %v1733
  %v1990 = vmax.f32 %v1606, %v1734
  %v1991 = vmax.f32 %v1607, %v1735
  %v1992 = vmax.f32 %v1608, %v1736
  %v1993 = vmax.f32 %v1609, %v1737
  %v1994 = vmax.f32 %v1610, %v1738
  %v1995 = vsub.f32 %v1963, %v1979
  %v1996 = vsub.f32 %v1964, %v1980
  %v1997 = vsub.f32 %v1965, %v1981
  %v1998 = vsub.f32 %v1966, %v1982
  %v1999 = vsub.f32 %v1967, %v1983
  %v2000 = vsub.f32 %v1968, %v1984
  %v2001 = vsub.f32 %v1969, %v1985
  %v2002 = vsub.f32 %v1970, %v1986
  %v2003 = vsub.f32 %v1971, %v1987
  %v2004 = vsub.f32 %v1972, %v1988
  %v2005 = vsub.f32 %v1973, %v1989
  %v2006 = vsub.f32 %v1974, %v1990
  %v2007 = vsub.f32 %v1975, %v1991
  %v2008 = vsub.f32 %v1976, %v1992
  %v2009 = vsub.f32 %v1977, %v1993
  %v2010 = vsub.f32 %v1978, %v1994
  %v2011 = vmax.f32 %v1995, 0.0
  %v2012 = vmax.f32 %v1996, 0.0
  %v2013 = vmax.f32 %v1997, 0.0
  %v2014 = vmax.f32 %v1998, 0.0
  %v2015 = vmax.f32 %v1999, 0.0
  %v2016 = vmax.f32 %v2000, 0.0
  %v2017 = vmax.f32 %v2001, 0.0
  %v2018 = vmax.f32 %v2002, 0.0
  %v2019 = vmax.f32 %v2003, 0.0
  %v2020 = vmax.f32 %v2004, 0.0
  %v2021 = vmax.f32 %v2005, 0.0
  %v2022 = vmax.f32 %v2006, 0.0
  %v2023 = vmax.f32 %v2007, 0.0
  %v2024 = vmax.f32 %v2008, 0.0
  %v2025 = vmax.f32 %v2009, 0.0
  %v2026 = vmax.f32 %v2010, 0.0
  %2043 = vrot.lane.b32.xlu0 %v2011, 127
  %v2044 = vpop.permute.xlu0 %2043
  %2045 = vrot.lane.b32.xlu0 %v2012, 127
  %v2046 = vpop.permute.xlu0 %2045
  %2047 = vrot.lane.b32.xlu0 %v2013, 127
  %v2048 = vpop.permute.xlu0 %2047
  %2049 = vrot.lane.b32.xlu0 %v2014, 127
  %v2050 = vpop.permute.xlu0 %2049
  %2051 = vrot.lane.b32.xlu0 %v2015, 127
  %v2052 = vpop.permute.xlu0 %2051
  %2053 = vrot.lane.b32.xlu0 %v2016, 127
  %v2054 = vpop.permute.xlu0 %2053
  %2055 = vrot.lane.b32.xlu0 %v2017, 127
  %v2056 = vpop.permute.xlu0 %2055
  %2057 = vrot.lane.b32.xlu0 %v2018, 127
  %v2058 = vpop.permute.xlu0 %2057
  %2059 = vrot.lane.b32.xlu0 %v2019, 127
  %v2060 = vpop.permute.xlu0 %2059
  %2061 = vrot.lane.b32.xlu0 %v2020, 127
  %v2062 = vpop.permute.xlu0 %2061
  %2063 = vrot.lane.b32.xlu0 %v2021, 127
  %v2064 = vpop.permute.xlu0 %2063
  %2065 = vrot.lane.b32.xlu0 %v2022, 127
  %v2066 = vpop.permute.xlu0 %2065
  %2067 = vrot.lane.b32.xlu0 %v2023, 127
  %v2068 = vpop.permute.xlu0 %2067
  %2069 = vrot.lane.b32.xlu0 %v2024, 127
  %v2070 = vpop.permute.xlu0 %2069
  %2071 = vrot.lane.b32.xlu0 %v2025, 127
  %v2072 = vpop.permute.xlu0 %2071
  %2073 = vrot.lane.b32.xlu0 %v2026, 127
  %v2074 = vpop.permute.xlu0 %2073
  %v2091 = vmul.f32 %v1947, %v2044
  %v2092 = vmul.f32 %v1948, %v2046
  %v2093 = vmul.f32 %v1949, %v2048
  %v2094 = vmul.f32 %v1950, %v2050
  %v2095 = vmul.f32 %v1951, %v2052
  %v2096 = vmul.f32 %v1952, %v2054
  %v2097 = vmul.f32 %v1953, %v2056
  %v2098 = vmul.f32 %v1954, %v2058
  %v2099 = vmul.f32 %v1955, %v2060
  %v2100 = vmul.f32 %v1956, %v2062
  %v2101 = vmul.f32 %v1957, %v2064
  %v2102 = vmul.f32 %v1958, %v2066
  %v2103 = vmul.f32 %v1959, %v2068
  %v2104 = vmul.f32 %v1960, %v2070
  %v2105 = vmul.f32 %v1961, %v2072
  %v2106 = vmul.f32 %v1962, %v2074
  %v2107 = vadd.f32 %v1787, %v1883
  %v2108 = vadd.f32 %v1788, %v1884
  %v2109 = vadd.f32 %v1789, %v1885
  %v2110 = vadd.f32 %v1790, %v1886
  %v2111 = vadd.f32 %v1791, %v1887
  %v2112 = vadd.f32 %v1792, %v1888
  %v2113 = vadd.f32 %v1793, %v1889
  %v2114 = vadd.f32 %v1794, %v1890
  %v2115 = vadd.f32 %v1795, %v1891
  %v2116 = vadd.f32 %v1796, %v1892
  %v2117 = vadd.f32 %v1797, %v1893
  %v2118 = vadd.f32 %v1798, %v1894
  %v2119 = vadd.f32 %v1799, %v1895
  %v2120 = vadd.f32 %v1800, %v1896
  %v2121 = vadd.f32 %v1801, %v1897
  %v2122 = vadd.f32 %v1802, %v1898
  %v2123 = vsub.f32 %v2107, %v2091
  %v2124 = vsub.f32 %v2108, %v2092
  %v2125 = vsub.f32 %v2109, %v2093
  %v2126 = vsub.f32 %v2110, %v2094
  %v2127 = vsub.f32 %v2111, %v2095
  %v2128 = vsub.f32 %v2112, %v2096
  %v2129 = vsub.f32 %v2113, %v2097
  %v2130 = vsub.f32 %v2114, %v2098
  %v2131 = vsub.f32 %v2115, %v2099
  %v2132 = vsub.f32 %v2116, %v2100
  %v2133 = vsub.f32 %v2117, %v2101
  %v2134 = vsub.f32 %v2118, %v2102
  %v2135 = vsub.f32 %v2119, %v2103
  %v2136 = vsub.f32 %v2120, %v2104
  %v2137 = vsub.f32 %v2121, %v2105
  %v2138 = vsub.f32 %v2122, %v2106
  %v2139 = vadd.f32 %v2123, 1e-07
  %v2140 = vadd.f32 %v2124, 1e-07
  %v2141 = vadd.f32 %v2125, 1e-07
  %v2142 = vadd.f32 %v2126, 1e-07
  %v2143 = vadd.f32 %v2127, 1e-07
  %v2144 = vadd.f32 %v2128, 1e-07
  %v2145 = vadd.f32 %v2129, 1e-07
  %v2146 = vadd.f32 %v2130, 1e-07
  %v2147 = vadd.f32 %v2131, 1e-07
  %v2148 = vadd.f32 %v2132, 1e-07
  %v2149 = vadd.f32 %v2133, 1e-07
  %v2150 = vadd.f32 %v2134, 1e-07
  %v2151 = vadd.f32 %v2135, 1e-07
  %v2152 = vadd.f32 %v2136, 1e-07
  %v2153 = vadd.f32 %v2137, 1e-07
  %v2154 = vadd.f32 %v2138, 1e-07
  %v2155 = vrcp.pop %v2139
  %v2156 = vmul.f32 %v2091, %v2155
  %v2157 = vrcp.pop %v2140
  %v2158 = vmul.f32 %v2092, %v2157
  %v2159 = vrcp.pop %v2141
  %v2160 = vmul.f32 %v2093, %v2159
  %v2161 = vrcp.pop %v2142
  %v2162 = vmul.f32 %v2094, %v2161
  %v2163 = vrcp.pop %v2143
  %v2164 = vmul.f32 %v2095, %v2163
  %v2165 = vrcp.pop %v2144
  %v2166 = vmul.f32 %v2096, %v2165
  %v2167 = vrcp.pop %v2145
  %v2168 = vmul.f32 %v2097, %v2167
  %v2169 = vrcp.pop %v2146
  %v2170 = vmul.f32 %v2098, %v2169
  %v2171 = vrcp.pop %v2147
  %v2172 = vmul.f32 %v2099, %v2171
  %v2173 = vrcp.pop %v2148
  %v2174 = vmul.f32 %v2100, %v2173
  %v2175 = vrcp.pop %v2149
  %v2176 = vmul.f32 %v2101, %v2175
  %v2177 = vrcp.pop %v2150
  %v2178 = vmul.f32 %v2102, %v2177
  %v2179 = vrcp.pop %v2151
  %v2180 = vmul.f32 %v2103, %v2179
  %v2181 = vrcp.pop %v2152
  %v2182 = vmul.f32 %v2104, %v2181
  %v2183 = vrcp.pop %v2153
  %v2184 = vmul.f32 %v2105, %v2183
  %v2185 = vrcp.pop %v2154
  %v2186 = vmul.f32 %v2106, %v2185
  %v2187 = vmax.f32 %v1611, %v1739
  %v2188 = vmax.f32 %v1612, %v1740
  %v2189 = vmax.f32 %v1613, %v1741
  %v2190 = vmax.f32 %v1614, %v1742
  %v2191 = vmax.f32 %v1615, %v1743
  %v2192 = vmax.f32 %v1616, %v1744
  %v2193 = vmax.f32 %v1617, %v1745
  %v2194 = vmax.f32 %v1618, %v1746
  %v2195 = vmax.f32 %v1619, %v1747
  %v2196 = vmax.f32 %v1620, %v1748
  %v2197 = vmax.f32 %v1621, %v1749
  %v2198 = vmax.f32 %v1622, %v1750
  %v2199 = vmax.f32 %v1623, %v1751
  %v2200 = vmax.f32 %v1624, %v1752
  %v2201 = vmax.f32 %v1625, %v1753
  %v2202 = vmax.f32 %v1626, %v1754
  %v2203 = vmin.f32 %v1563, %v1723
  %v2204 = vmin.f32 %v1564, %v1724
  %v2205 = vmin.f32 %v1565, %v1725
  %v2206 = vmin.f32 %v1566, %v1726
  %v2207 = vmin.f32 %v1567, %v1727
  %v2208 = vmin.f32 %v1568, %v1728
  %v2209 = vmin.f32 %v1569, %v1729
  %v2210 = vmin.f32 %v1570, %v1730
  %v2211 = vmin.f32 %v1571, %v1731
  %v2212 = vmin.f32 %v1572, %v1732
  %v2213 = vmin.f32 %v1573, %v1733
  %v2214 = vmin.f32 %v1574, %v1734
  %v2215 = vmin.f32 %v1575, %v1735
  %v2216 = vmin.f32 %v1576, %v1736
  %v2217 = vmin.f32 %v1577, %v1737
  %v2218 = vmin.f32 %v1578, %v1738
  %v2219 = vsub.f32 %v2187, %v2203
  %v2220 = vsub.f32 %v2188, %v2204
  %v2221 = vsub.f32 %v2189, %v2205
  %v2222 = vsub.f32 %v2190, %v2206
  %v2223 = vsub.f32 %v2191, %v2207
  %v2224 = vsub.f32 %v2192, %v2208
  %v2225 = vsub.f32 %v2193, %v2209
  %v2226 = vsub.f32 %v2194, %v2210
  %v2227 = vsub.f32 %v2195, %v2211
  %v2228 = vsub.f32 %v2196, %v2212
  %v2229 = vsub.f32 %v2197, %v2213
  %v2230 = vsub.f32 %v2198, %v2214
  %v2231 = vsub.f32 %v2199, %v2215
  %v2232 = vsub.f32 %v2200, %v2216
  %v2233 = vsub.f32 %v2201, %v2217
  %v2234 = vsub.f32 %v2202, %v2218
  %v2235 = vmax.f32 %v1627, %v1739
  %v2236 = vmax.f32 %v1628, %v1740
  %v2237 = vmax.f32 %v1629, %v1741
  %v2238 = vmax.f32 %v1630, %v1742
  %v2239 = vmax.f32 %v1631, %v1743
  %v2240 = vmax.f32 %v1632, %v1744
  %v2241 = vmax.f32 %v1633, %v1745
  %v2242 = vmax.f32 %v1634, %v1746
  %v2243 = vmax.f32 %v1635, %v1747
  %v2244 = vmax.f32 %v1636, %v1748
  %v2245 = vmax.f32 %v1637, %v1749
  %v2246 = vmax.f32 %v1638, %v1750
  %v2247 = vmax.f32 %v1639, %v1751
  %v2248 = vmax.f32 %v1640, %v1752
  %v2249 = vmax.f32 %v1641, %v1753
  %v2250 = vmax.f32 %v1642, %v1754
  %v2251 = vmin.f32 %v1595, %v1723
  %v2252 = vmin.f32 %v1596, %v1724
  %v2253 = vmin.f32 %v1597, %v1725
  %v2254 = vmin.f32 %v1598, %v1726
  %v2255 = vmin.f32 %v1599, %v1727
  %v2256 = vmin.f32 %v1600, %v1728
  %v2257 = vmin.f32 %v1601, %v1729
  %v2258 = vmin.f32 %v1602, %v1730
  %v2259 = vmin.f32 %v1603, %v1731
  %v2260 = vmin.f32 %v1604, %v1732
  %v2261 = vmin.f32 %v1605, %v1733
  %v2262 = vmin.f32 %v1606, %v1734
  %v2263 = vmin.f32 %v1607, %v1735
  %v2264 = vmin.f32 %v1608, %v1736
  %v2265 = vmin.f32 %v1609, %v1737
  %v2266 = vmin.f32 %v1610, %v1738
  %v2267 = vsub.f32 %v2235, %v2251
  %v2268 = vsub.f32 %v2236, %v2252
  %v2269 = vsub.f32 %v2237, %v2253
  %v2270 = vsub.f32 %v2238, %v2254
  %v2271 = vsub.f32 %v2239, %v2255
  %v2272 = vsub.f32 %v2240, %v2256
  %v2273 = vsub.f32 %v2241, %v2257
  %v2274 = vsub.f32 %v2242, %v2258
  %v2275 = vsub.f32 %v2243, %v2259
  %v2276 = vsub.f32 %v2244, %v2260
  %v2277 = vsub.f32 %v2245, %v2261
  %v2278 = vsub.f32 %v2246, %v2262
  %v2279 = vsub.f32 %v2247, %v2263
  %v2280 = vsub.f32 %v2248, %v2264
  %v2281 = vsub.f32 %v2249, %v2265
  %v2282 = vsub.f32 %v2250, %v2266
  %2299 = vrot.lane.b32.xlu0 %v2267, 127
  %v2300 = vpop.permute.xlu0 %2299
  %2301 = vrot.lane.b32.xlu0 %v2268, 127
  %v2302 = vpop.permute.xlu0 %2301
  %2303 = vrot.lane.b32.xlu0 %v2269, 127
  %v2304 = vpop.permute.xlu0 %2303
  %2305 = vrot.lane.b32.xlu0 %v2270, 127
  %v2306 = vpop.permute.xlu0 %2305
  %2307 = vrot.lane.b32.xlu0 %v2271, 127
  %v2308 = vpop.permute.xlu0 %2307
  %2309 = vrot.lane.b32.xlu0 %v2272, 127
  %v2310 = vpop.permute.xlu0 %2309
  %2311 = vrot.lane.b32.xlu0 %v2273, 127
  %v2312 = vpop.permute.xlu0 %2311
  %2313 = vrot.lane.b32.xlu0 %v2274, 127
  %v2314 = vpop.permute.xlu0 %2313
  %2315 = vrot.lane.b32.xlu0 %v2275, 127
  %v2316 = vpop.permute.xlu0 %2315
  %2317 = vrot.lane.b32.xlu0 %v2276, 127
  %v2318 = vpop.permute.xlu0 %2317
  %2319 = vrot.lane.b32.xlu0 %v2277, 127
  %v2320 = vpop.permute.xlu0 %2319
  %2321 = vrot.lane.b32.xlu0 %v2278, 127
  %v2322 = vpop.permute.xlu0 %2321
  %2323 = vrot.lane.b32.xlu0 %v2279, 127
  %v2324 = vpop.permute.xlu0 %2323
  %2325 = vrot.lane.b32.xlu0 %v2280, 127
  %v2326 = vpop.permute.xlu0 %2325
  %2327 = vrot.lane.b32.xlu0 %v2281, 127
  %v2328 = vpop.permute.xlu0 %2327
  %2329 = vrot.lane.b32.xlu0 %v2282, 127
  %v2330 = vpop.permute.xlu0 %2329
  %v2347 = vmul.f32 %v2219, %v2300
  %v2348 = vmul.f32 %v2220, %v2302
  %v2349 = vmul.f32 %v2221, %v2304
  %v2350 = vmul.f32 %v2222, %v2306
  %v2351 = vmul.f32 %v2223, %v2308
  %v2352 = vmul.f32 %v2224, %v2310
  %v2353 = vmul.f32 %v2225, %v2312
  %v2354 = vmul.f32 %v2226, %v2314
  %v2355 = vmul.f32 %v2227, %v2316
  %v2356 = vmul.f32 %v2228, %v2318
  %v2357 = vmul.f32 %v2229, %v2320
  %v2358 = vmul.f32 %v2230, %v2322
  %v2359 = vmul.f32 %v2231, %v2324
  %v2360 = vmul.f32 %v2232, %v2326
  %v2361 = vmul.f32 %v2233, %v2328
  %v2362 = vmul.f32 %v2234, %v2330
  %v2363 = vsub.f32 %v2347, %v2123
  %v2364 = vsub.f32 %v2348, %v2124
  %v2365 = vsub.f32 %v2349, %v2125
  %v2366 = vsub.f32 %v2350, %v2126
  %v2367 = vsub.f32 %v2351, %v2127
  %v2368 = vsub.f32 %v2352, %v2128
  %v2369 = vsub.f32 %v2353, %v2129
  %v2370 = vsub.f32 %v2354, %v2130
  %v2371 = vsub.f32 %v2355, %v2131
  %v2372 = vsub.f32 %v2356, %v2132
  %v2373 = vsub.f32 %v2357, %v2133
  %v2374 = vsub.f32 %v2358, %v2134
  %v2375 = vsub.f32 %v2359, %v2135
  %v2376 = vsub.f32 %v2360, %v2136
  %v2377 = vsub.f32 %v2361, %v2137
  %v2378 = vsub.f32 %v2362, %v2138
  %v2379 = vadd.f32 %v2347, 1e-07
  %v2380 = vadd.f32 %v2348, 1e-07
  %v2381 = vadd.f32 %v2349, 1e-07
  %v2382 = vadd.f32 %v2350, 1e-07
  %v2383 = vadd.f32 %v2351, 1e-07
  %v2384 = vadd.f32 %v2352, 1e-07
  %v2385 = vadd.f32 %v2353, 1e-07
  %v2386 = vadd.f32 %v2354, 1e-07
  %v2387 = vadd.f32 %v2355, 1e-07
  %v2388 = vadd.f32 %v2356, 1e-07
  %v2389 = vadd.f32 %v2357, 1e-07
  %v2390 = vadd.f32 %v2358, 1e-07
  %v2391 = vadd.f32 %v2359, 1e-07
  %v2392 = vadd.f32 %v2360, 1e-07
  %v2393 = vadd.f32 %v2361, 1e-07
  %v2394 = vadd.f32 %v2362, 1e-07
  %v2395 = vrcp.pop %v2379
  %v2396 = vmul.f32 %v2363, %v2395
  %v2397 = vrcp.pop %v2380
  %v2398 = vmul.f32 %v2364, %v2397
  %v2399 = vrcp.pop %v2381
  %v2400 = vmul.f32 %v2365, %v2399
  %v2401 = vrcp.pop %v2382
  %v2402 = vmul.f32 %v2366, %v2401
  %v2403 = vrcp.pop %v2383
  %v2404 = vmul.f32 %v2367, %v2403
  %v2405 = vrcp.pop %v2384
  %v2406 = vmul.f32 %v2368, %v2405
  %v2407 = vrcp.pop %v2385
  %v2408 = vmul.f32 %v2369, %v2407
  %v2409 = vrcp.pop %v2386
  %v2410 = vmul.f32 %v2370, %v2409
  %v2411 = vrcp.pop %v2387
  %v2412 = vmul.f32 %v2371, %v2411
  %v2413 = vrcp.pop %v2388
  %v2414 = vmul.f32 %v2372, %v2413
  %v2415 = vrcp.pop %v2389
  %v2416 = vmul.f32 %v2373, %v2415
  %v2417 = vrcp.pop %v2390
  %v2418 = vmul.f32 %v2374, %v2417
  %v2419 = vrcp.pop %v2391
  %v2420 = vmul.f32 %v2375, %v2419
  %v2421 = vrcp.pop %v2392
  %v2422 = vmul.f32 %v2376, %v2421
  %v2423 = vrcp.pop %v2393
  %v2424 = vmul.f32 %v2377, %v2423
  %v2425 = vrcp.pop %v2394
  %v2426 = vmul.f32 %v2378, %v2425
  %v2427 = vsub.f32 %v2156, %v2396
  %v2428 = vsub.f32 %v2158, %v2398
  %v2429 = vsub.f32 %v2160, %v2400
  %v2430 = vsub.f32 %v2162, %v2402
  %v2431 = vsub.f32 %v2164, %v2404
  %v2432 = vsub.f32 %v2166, %v2406
  %v2433 = vsub.f32 %v2168, %v2408
  %v2434 = vsub.f32 %v2170, %v2410
  %v2435 = vsub.f32 %v2172, %v2412
  %v2436 = vsub.f32 %v2174, %v2414
  %v2437 = vsub.f32 %v2176, %v2416
  %v2438 = vsub.f32 %v2178, %v2418
  %v2439 = vsub.f32 %v2180, %v2420
  %v2440 = vsub.f32 %v2182, %v2422
  %v2441 = vsub.f32 %v2184, %v2424
  %v2442 = vsub.f32 %v2186, %v2426
  %v2443 = vsub.f32 1.0, %v2427
  %v2444 = vsub.f32 1.0, %v2428
  %v2445 = vsub.f32 1.0, %v2429
  %v2446 = vsub.f32 1.0, %v2430
  %v2447 = vsub.f32 1.0, %v2431
  %v2448 = vsub.f32 1.0, %v2432
  %v2449 = vsub.f32 1.0, %v2433
  %v2450 = vsub.f32 1.0, %v2434
  %v2451 = vsub.f32 1.0, %v2435
  %v2452 = vsub.f32 1.0, %v2436
  %v2453 = vsub.f32 1.0, %v2437
  %v2454 = vsub.f32 1.0, %v2438
  %v2455 = vsub.f32 1.0, %v2439
  %v2456 = vsub.f32 1.0, %v2440
  %v2457 = vsub.f32 1.0, %v2441
  %v2458 = vsub.f32 1.0, %v2442
  %v2459 = vmul.f32 %v2443, %v1106
  %v2460 = vmul.f32 %v2444, %v1107
  %v2461 = vmul.f32 %v2445, %v1108
  %v2462 = vmul.f32 %v2446, %v1109
  %v2463 = vmul.f32 %v2447, %v1110
  %v2464 = vmul.f32 %v2448, %v1111
  %v2465 = vmul.f32 %v2449, %v1112
  %v2466 = vmul.f32 %v2450, %v1113
  %v2467 = vmul.f32 %v2451, %v1114
  %v2468 = vmul.f32 %v2452, %v1115
  %v2469 = vmul.f32 %v2453, %v1116
  %v2470 = vmul.f32 %v2454, %v1117
  %v2471 = vmul.f32 %v2455, %v1118
  %v2472 = vmul.f32 %v2456, %v1119
  %v2473 = vmul.f32 %v2457, %v1120
  %v2474 = vmul.f32 %v2458, %v1121
  %v2475 = vsel %vm1506, %v2459, 0.0
  %v2476 = vsel %vm1506, %v2460, 0.0
  %v2477 = vadd.f32 %v2475, %v2476
  %v2478 = vsel %vm1506, %v2461, 0.0
  %v2479 = vadd.f32 %v2477, %v2478
  %v2480 = vsel %vm1506, %v2462, 0.0
  %v2481 = vadd.f32 %v2479, %v2480
  %v2482 = vsel %vm1506, %v2463, 0.0
  %v2483 = vadd.f32 %v2481, %v2482
  %v2484 = vsel %vm1506, %v2464, 0.0
  %v2485 = vadd.f32 %v2483, %v2484
  %v2486 = vsel %vm1506, %v2465, 0.0
  %v2487 = vadd.f32 %v2485, %v2486
  %v2488 = vsel %vm1506, %v2466, 0.0
  %v2489 = vadd.f32 %v2487, %v2488
  %v2490 = vsel %vm1506, %v2467, 0.0
  %v2491 = vadd.f32 %v2489, %v2490
  %v2492 = vsel %vm1506, %v2468, 0.0
  %v2493 = vadd.f32 %v2491, %v2492
  %v2494 = vsel %vm1506, %v2469, 0.0
  %v2495 = vadd.f32 %v2493, %v2494
  %v2496 = vsel %vm1506, %v2470, 0.0
  %v2497 = vadd.f32 %v2495, %v2496
  %v2498 = vsel %vm1506, %v2471, 0.0
  %v2499 = vadd.f32 %v2497, %v2498
  %v2500 = vsel %vm1506, %v2472, 0.0
  %v2501 = vadd.f32 %v2499, %v2500
  %v2502 = vsel %vm1506, %v2473, 0.0
  %v2503 = vadd.f32 %v2501, %v2502
  %v2504 = vsel %vm1506, %v2474, 0.0
  %v2505 = vadd.f32 %v2503, %v2504
  %2506 = vadd.xlane.f32.xlu0 %v2505
  %v2507 = vpop.xlane.xlu0 %2506
  %v2508 = vrot.slane %v2507, 4
  %v2509 = vadd.f32 %v2507, %v2508
  %v2510 = vrot.slane %v2509, 2
  %v2511 = vadd.f32 %v2509, %v2510
  %v2512 = vrot.slane %v2511, 1
  %v2513 = vadd.f32 %v2511, %v2512
  %s2514 = vtos %v2513
  %vm2515 = vcmp.eq.s32.totalorder %v196, 0
  %vm2516 = vcmp.eq.s32.totalorder %v196, 1
  %vm2517 = vcmp.eq.s32.totalorder %v196, 2
  %v2518 = vstv %s2514
  %v2519 = vsel %vm2517, %v2518, 0.0
  %v2520 = vstv %s1546
  %v2521 = vsel %vm2516, %v2520, %v2519
  %v2522 = vstv %s48
  %v2523 = vsel %vm2515, %v2522, %v2521
  %2524 = vst [vmem:[%s5] sm:$0x1] %v2523
  // Predicated region
  $region22: #{_transt_losses.1} parent=0 // pred_check
    _
  $region23: #{_transt_losses.1} parent=0 // pred_check_branch
    %2526 = sbr.rel (0) target = $region25
  $region24: #{_transt_losses.1} parent=0 // pred_region
    _
  $region25: #{_transt_losses.1} parent=0 // pred_fallthru
    _
  // Predicated region
  $region26: #{_transt_losses.1} parent=0 // pred_check
    _
  $region27: #{_transt_losses.1} parent=0 // pred_check_branch
    %2528 = sbr.rel (0) target = $region29
  $region28: #{_transt_losses.1} parent=0 // pred_region
    _
  $region29: #{_transt_losses.1} parent=0 // pred_fallthru
    _

</llo_original>
